<compile_context>
chip_gen: v6e
topology: v6e:2x2x1
jax: 0.10.0
libtpu: 0.0.40
codegen_flags: <defaults>
</compile_context>

<pallas_src>
import numpy as np
import jax
import jax.numpy as jnp
from jax import lax
from jax.experimental import pallas as pl
from jax.experimental.pallas import tpu as pltpu


# ----------------------- fused Pallas kernel: whole CSPStem -----------------------
def _make_stem_kernel(H, W, K, Cbtn, has_proj_flags, act_name, n_images):
    pad = (K - 1) // 2
    HW = H * W

    def act(v):
        if act_name == "relu":
            return jnp.maximum(v, 0.0)
        return v * jax.nn.sigmoid(v)                  # silu (sigmoid -> EUP slot)

    def kernel(*refs):
        mask_ref = refs[0]                            # (K*K*Cbtn, HW) 0/1 border masks
        x_ref = refs[1]                               # (n_images, Cin0, HW)
        o_ref = refs[-1]                              # (n_images, Cout, HW)
        wrefs = refs[2:-1]                            # per block: wcat, b1b, w2f, bsumb

        for n in range(n_images):                     # batch looped inside one grid step
            x = x_ref[n].astype(jnp.float32)          # (Cin, HW), lane-dense
            i = 0
            for has_proj in has_proj_flags:
                wcat, b1b, w2f, bsumb = wrefs[i:i + 4]
                i += 4

                # conv1 (+ residual 1x1 proj if present) fused into ONE matmul over x.
                t = jnp.dot(wcat[...], x, preferred_element_type=jnp.float32)
                if has_proj:
                    h = act(t[:Cbtn] + b1b[...])      # bottleneck activation (Cbtn, HW)
                    res = t[Cbtn:]                    # projected residual (Cout, HW)
                else:
                    h = act(t + b1b[...])
                    res = x                           # identity residual (Cin == Cout)

                # conv2: KxK 'same' conv as a single im2col matmul.  Taps built with
                # XLU rolls; borders zeroed by lane-dense vmuls against the
                # pre-broadcast (Cbtn, HW) mask slices (no sublane broadcasts).
                cols = []
                ti = 0
                for dy in range(-pad, K - pad):
                    for dx in range(-pad, K - pad):
                        off = dy * W + dx
                        center = (dy == 0 and dx == 0)
                        r = h if center else pltpu.roll(h, shift=(-off) % HW, axis=1)
                        if not center:
                            r = r * mask_ref[pl.ds(ti * Cbtn, Cbtn), :]
                        cols.append(r)
                        ti += 1
                y = jnp.dot(w2f[...], jnp.concatenate(cols, axis=0),
                            preferred_element_type=jnp.float32)

                x = act(y + res + bsumb[...])         # bsumb = b2 (+ br), pre-broadcast

            o_ref[n] = x.astype(o_ref.dtype)

    return kernel


def _default_batch_grid():
    """Batch on the grid only on parts with >1 TensorCore per chip (v7x);
    on single-TC v5e/v6e a batch grid is just serial per-step overhead."""
    try:
        kind = jax.devices()[0].device_kind.lower()
    except Exception:
        return False
    return ("v7" in kind) or ("7x" in kind)


def csp_stem_forward(x_nchw, blocks, kernel_size, act_name="silu", batch_grid=None):
    N, Cin0, H, W = x_nchw.shape
    K = kernel_size
    pad = (K - 1) // 2
    HW = H * W
    Cbtn = blocks[0]["w1_oihw"].shape[0]
    Cout = blocks[-1]["w2_oihw"].shape[0]

    # explicit channel checks (the identity-residual path needs in_c == out_c)
    cin = Cin0
    for p in blocks:
        bout = p["w2_oihw"].shape[0]
        assert p["w1_oihw"].shape[1] == cin, "block input channel mismatch"
        assert p["w1_oihw"].shape[0] == Cbtn, "btn_c must be constant across blocks"
        if p["wr_oihw"] is None:
            assert cin == bout, "identity residual requires in_c == out_c"
        cin = bout

    # 0/1 border-validity masks for the K*K taps, pre-broadcast to Cbtn sublanes
    ys, xs = np.divmod(np.arange(HW), W)
    mrows = []
    for dy in range(-pad, K - pad):
        for dx in range(-pad, K - pad):
            mrows.append(((ys + dy >= 0) & (ys + dy < H) &
                          (xs + dx >= 0) & (xs + dx < W)).astype(np.float32))
    masks = jnp.asarray(np.repeat(np.stack(mrows), Cbtn, axis=0))    # (K*K*Cbtn, HW)

    # pack per-block weights into kernel (weight-stationary) layout, host-side
    wargs, has_proj_flags = [], []
    for p in blocks:
        bout = p["w2_oihw"].shape[0]
        has_proj = p["wr_oihw"] is not None
        w1 = p["w1_oihw"][:, :, 0, 0]                                # (Cbtn, bin_c)
        wcat = (jnp.concatenate([w1, p["wr_oihw"][:, :, 0, 0]], axis=0)
                if has_proj else w1)                                 # stacked conv1+proj
        b1b = jnp.broadcast_to(p["b1"][:, None], (Cbtn, HW))         # pre-broadcast bias
        w2f = jnp.transpose(p["w2_oihw"], (0, 2, 3, 1)).reshape(bout, K * K * Cbtn)
        bsum = p["b2"] + (p["br"] if has_proj else 0.0)              # b2 (+ br) pre-summed
        bsumb = jnp.broadcast_to(bsum[:, None], (bout, HW))
        wargs += [wcat, b1b, w2f, bsumb]
        has_proj_flags.append(has_proj)
    has_proj_flags = tuple(has_proj_flags)

    if batch_grid is None:
        batch_grid = _default_batch_grid()

    x_flat = x_nchw.reshape(N, Cin0, HW)              # free reshape, stays channel-major
    n_images = 1 if batch_grid else N
    if batch_grid:
        grid = (N,)
        x_spec = pl.BlockSpec((1, Cin0, HW), lambda b: (b, 0, 0))
        o_spec = pl.BlockSpec((1, Cout, HW), lambda b: (b, 0, 0))
        sem = ("parallel",)                           # v7x: batch across both TCs
    else:
        grid = (1,)
        x_spec = pl.BlockSpec((N, Cin0, HW), lambda b: (0, 0, 0))
        o_spec = pl.BlockSpec((N, Cout, HW), lambda b: (0, 0, 0))
        sem = ("arbitrary",)                          # one grid step on v5e/v6e

    def full(a):                                      # whole-array (replicated) spec
        return pl.BlockSpec(a.shape, lambda b, _nd=a.ndim: (0,) * _nd)

    kernel = _make_stem_kernel(H, W, K, Cbtn, has_proj_flags, act_name, n_images)

    out = pl.pallas_call(
        kernel,
        out_shape=jax.ShapeDtypeStruct((N, Cout, HW), x_nchw.dtype),
        grid=grid,
        in_specs=[full(masks), x_spec] + [full(w) for w in wargs],
        out_specs=o_spec,
        compiler_params=pltpu.CompilerParams(dimension_semantics=sem),
    )(masks, x_flat, *wargs)
    return out.reshape(N, Cout, H, W)


# --------------- deterministic parameter construction (BN folded) ---------------
def fold_bn(w_oihw, gamma, beta, mean, var, eps=1e-5):
    scale = gamma / jnp.sqrt(var + eps)
    w = w_oihw * scale[:, None, None, None]
    b = beta - scale * mean
    return w, b


def init_convbn_folded(key, in_c, out_c, ksize):
    k1, k2, k3, k4, k5 = jax.random.split(key, 5)
    w = jax.random.normal(k1, (out_c, in_c, ksize, ksize), jnp.float32) * 0.1
    gamma = jax.random.uniform(k2, (out_c,), jnp.float32, minval=0.5, maxval=1.5)
    beta = jax.random.normal(k3, (out_c,), jnp.float32) * 0.1
    mean = jax.random.normal(k4, (out_c,), jnp.float32) * 0.1
    var = jax.random.uniform(k5, (out_c,), jnp.float32, minval=0.5, maxval=1.5)
    return fold_bn(w, gamma, beta, mean, var)


def init_csp_stem(key, in_c, out_c, btn_c, stride, kernel_size, num_blocks,
                  block_type="k1kx"):
    # TODO(synk): block_type='kxkx' (KxK first conv) and reparam=True (RepConv)
    # are not implemented; the PyTorch defaults ('k1kx', reparam=False) are covered.
    assert block_type == "k1kx"
    if stride == 2:
        num_blocks = num_blocks - 1
    out_half = out_c // 2
    K = kernel_size
    blocks = []
    keys = jax.random.split(key, num_blocks)
    for block_id in range(num_blocks):
        bin_c = in_c // 2 if (stride == 1 and block_id == 0) else out_half
        bk = jax.random.split(keys[block_id], 3)
        w1, b1 = init_convbn_folded(bk[0], bin_c, btn_c, 1)          # conv1: 1x1
        w2, b2 = init_convbn_folded(bk[1], btn_c, out_half, K)       # conv2: KxK, stride 1
        has_proj = bin_c != out_half
        wr, br = (init_convbn_folded(bk[2], bin_c, out_half, 1)
                  if has_proj else (None, None))
        blocks.append({"w1_oihw": w1, "b1": b1, "w2_oihw": w2, "b2": b2,
                       "wr_oihw": wr, "br": br})
    return blocks


# --------------------------------- reference ------------------------------------
def _conv_nchw(x, w_oihw, bias):
    y = lax.conv_general_dilated(
        x, w_oihw, window_strides=(1, 1), padding="SAME",
        dimension_numbers=("NCHW", "OIHW", "NCHW"),
        precision=lax.Precision.HIGHEST)
    return y + bias.reshape(1, -1, 1, 1)


def csp_stem_ref(x_nchw, blocks, act_name="silu"):
    def a(v):
        return jnp.maximum(v, 0.0) if act_name == "relu" else v * jax.nn.sigmoid(v)
    x = x_nchw
    for p in blocks:
        res = _conv_nchw(x, p["wr_oihw"], p["br"]) if p["wr_oihw"] is not None else x
        h = a(_conv_nchw(x, p["w1_oihw"], p["b1"]))
        y = _conv_nchw(h, p["w2_oihw"], p["b2"])
        x = a(y + res)
    return x


# ------------------------------------ main --------------------------------------
if __name__ == "__main__":
    key = jax.random.PRNGKey(0)
    kx, kp = jax.random.split(key)

    # CSPStem(in_c=8, out_c=16, btn_c=8, stride=1, kernel_size=3, num_blocks=2)
    in_c, out_c, btn_c = 8, 16, 8
    stride, kernel_size, num_blocks = 1, 3, 2
    N, H, W = 2, 16, 16

    # With stride==1 the stem's first block consumes in_c//2 channels
    # (the CSP channel split), so the input tensor has in_c//2 channels.
    x = jax.random.normal(kx, (N, in_c // 2, H, W), jnp.float32)

    blocks = init_csp_stem(kp, in_c, out_c, btn_c, stride, kernel_size, num_blocks)

    fwd = jax.jit(lambda v: csp_stem_forward(v, blocks, kernel_size))
    out = jax.block_until_ready(fwd(x))

    ref = csp_stem_ref(x, blocks)
    assert out.shape == (N, out_c // 2, H, W), out.shape
    max_err = float(jnp.max(jnp.abs(out - ref)))
    assert jnp.allclose(out, ref, rtol=1e-3, atol=1e-3), max_err

    print("KERNEL_OK")
</pallas_src>

<mosaic_0001>
module attributes {stable_mosaic.version = 11 : i64} {
  func.func @kernel(%arg0: i32, %arg1: memref<72x256xf32, #tpu.memory_space<vmem>>, %arg2: memref<2x4x256xf32, #tpu.memory_space<vmem>>, %arg3: memref<16x4xf32, #tpu.memory_space<vmem>>, %arg4: memref<8x256xf32, #tpu.memory_space<vmem>>, %arg5: memref<8x72xf32, #tpu.memory_space<vmem>>, %arg6: memref<8x256xf32, #tpu.memory_space<vmem>>, %arg7: memref<8x8xf32, #tpu.memory_space<vmem>>, %arg8: memref<8x256xf32, #tpu.memory_space<vmem>>, %arg9: memref<8x72xf32, #tpu.memory_space<vmem>>, %arg10: memref<8x256xf32, #tpu.memory_space<vmem>>, %arg11: memref<2x8x256xf32, #tpu.memory_space<vmem>>) attributes {dimension_semantics = [#tpu.dimension_semantics<arbitrary>], iteration_bounds = array<i64: 1>, scalar_prefetch = 0 : i64, scratch_operands = 0 : i64, tpu.core_type = #tpu.core_type<tc>, window_params = [{pipeline_mode = #tpu.pipeline_mode<synchronous>, transform_indices = @transform_0, window_bounds = array<i64: 72, 256>}, {pipeline_mode = #tpu.pipeline_mode<synchronous>, transform_indices = @transform_1, window_bounds = array<i64: 2, 4, 256>}, {pipeline_mode = #tpu.pipeline_mode<synchronous>, transform_indices = @transform_2, window_bounds = array<i64: 16, 4>}, {pipeline_mode = #tpu.pipeline_mode<synchronous>, transform_indices = @transform_3, window_bounds = array<i64: 8, 256>}, {pipeline_mode = #tpu.pipeline_mode<synchronous>, transform_indices = @transform_4, window_bounds = array<i64: 8, 72>}, {pipeline_mode = #tpu.pipeline_mode<synchronous>, transform_indices = @transform_5, window_bounds = array<i64: 8, 256>}, {pipeline_mode = #tpu.pipeline_mode<synchronous>, transform_indices = @transform_6, window_bounds = array<i64: 8, 8>}, {pipeline_mode = #tpu.pipeline_mode<synchronous>, transform_indices = @transform_7, window_bounds = array<i64: 8, 256>}, {pipeline_mode = #tpu.pipeline_mode<synchronous>, transform_indices = @transform_8, window_bounds = array<i64: 8, 72>}, {pipeline_mode = #tpu.pipeline_mode<synchronous>, transform_indices = @transform_9, window_bounds = array<i64: 8, 256>}, {pipeline_mode = #tpu.pipeline_mode<synchronous>, transform_indices = @transform_10, window_bounds = array<i64: 2, 8, 256>}]} {
    %c0 = arith.constant 0 : index
    %c0_0 = arith.constant 0 : index
    %c0_1 = arith.constant 0 : index
    %0 = vector.load %arg2[%c0, %c0_0, %c0_1] : memref<2x4x256xf32, #tpu.memory_space<vmem>>, vector<1x4x256xf32>
    %1 = vector.shape_cast %0 : vector<1x4x256xf32> to vector<4x256xf32>
    %c0_2 = arith.constant 0 : index
    %c0_3 = arith.constant 0 : index
    %2 = vector.load %arg3[%c0_2, %c0_3] : memref<16x4xf32, #tpu.memory_space<vmem>>, vector<16x4xf32>
    %cst = arith.constant dense<0.000000e+00> : vector<16x256xf32>
    %3 = tpu.matmul %2, %1, %cst {dimension_numbers = #tpu.dot_dimension_numbers<[1], [0], [0], [1], [0, 0, 1, 1], [], []>} : vector<16x4xf32>, vector<4x256xf32>, vector<16x256xf32> -> vector<16x256xf32>
    %4 = vector.extract_strided_slice %3 {offsets = [0, 0], sizes = [8, 256], strides = [1, 1]} : vector<16x256xf32> to vector<8x256xf32>
    %c0_4 = arith.constant 0 : index
    %c0_5 = arith.constant 0 : index
    %5 = vector.load %arg4[%c0_4, %c0_5] : memref<8x256xf32, #tpu.memory_space<vmem>>, vector<8x256xf32>
    %6 = arith.addf %4, %5 : vector<8x256xf32>
    %7 = arith.negf %6 : vector<8x256xf32>
    %8 = math.exp %7 : vector<8x256xf32>
    %cst_6 = arith.constant 1.000000e+00 : f32
    %9 = vector.broadcast %cst_6 : f32 to vector<8x256xf32>
    %10 = arith.addf %9, %8 : vector<8x256xf32>
    %11 = arith.divf %9, %10 : vector<8x256xf32>
    %12 = arith.mulf %6, %11 : vector<8x256xf32>
    %13 = vector.extract_strided_slice %3 {offsets = [8, 0], sizes = [8, 256], strides = [1, 1]} : vector<16x256xf32> to vector<8x256xf32>
    %c17_i32 = arith.constant 17 : i32
    %14 = tpu.dynamic_rotate %12 by %c17_i32 dim 1 : vector<8x256xf32>, i32 -> vector<8x256xf32>
    %c0_7 = arith.constant 0 : index
    %c0_8 = arith.constant 0 : index
    %15 = vector.load %arg1[%c0_7, %c0_8] : memref<72x256xf32, #tpu.memory_space<vmem>>, vector<8x256xf32>
    %16 = arith.mulf %14, %15 : vector<8x256xf32>
    %c16_i32 = arith.constant 16 : i32
    %17 = tpu.dynamic_rotate %12 by %c16_i32 dim 1 : vector<8x256xf32>, i32 -> vector<8x256xf32>
    %c8 = arith.constant 8 : index
    %c0_9 = arith.constant 0 : index
    %18 = vector.load %arg1[%c8, %c0_9] : memref<72x256xf32, #tpu.memory_space<vmem>>, vector<8x256xf32>
    %19 = arith.mulf %17, %18 : vector<8x256xf32>
    %c15_i32 = arith.constant 15 : i32
    %20 = tpu.dynamic_rotate %12 by %c15_i32 dim 1 : vector<8x256xf32>, i32 -> vector<8x256xf32>
    %c16 = arith.constant 16 : index
    %c0_10 = arith.constant 0 : index
    %21 = vector.load %arg1[%c16, %c0_10] : memref<72x256xf32, #tpu.memory_space<vmem>>, vector<8x256xf32>
    %22 = arith.mulf %20, %21 : vector<8x256xf32>
    %c1_i32 = arith.constant 1 : i32
    %23 = tpu.dynamic_rotate %12 by %c1_i32 dim 1 : vector<8x256xf32>, i32 -> vector<8x256xf32>
    %c24 = arith.constant 24 : index
    %c0_11 = arith.constant 0 : index
    %24 = vector.load %arg1[%c24, %c0_11] : memref<72x256xf32, #tpu.memory_space<vmem>>, vector<8x256xf32>
    %25 = arith.mulf %23, %24 : vector<8x256xf32>
    %c255_i32 = arith.constant 255 : i32
    %26 = tpu.dynamic_rotate %12 by %c255_i32 dim 1 : vector<8x256xf32>, i32 -> vector<8x256xf32>
    %c40 = arith.constant 40 : index
    %c0_12 = arith.constant 0 : index
    %27 = vector.load %arg1[%c40, %c0_12] : memref<72x256xf32, #tpu.memory_space<vmem>>, vector<8x256xf32>
    %28 = arith.mulf %26, %27 : vector<8x256xf32>
    %c241_i32 = arith.constant 241 : i32
    %29 = tpu.dynamic_rotate %12 by %c241_i32 dim 1 : vector<8x256xf32>, i32 -> vector<8x256xf32>
    %c48 = arith.constant 48 : index
    %c0_13 = arith.constant 0 : index
    %30 = vector.load %arg1[%c48, %c0_13] : memref<72x256xf32, #tpu.memory_space<vmem>>, vector<8x256xf32>
    %31 = arith.mulf %29, %30 : vector<8x256xf32>
    %c240_i32 = arith.constant 240 : i32
    %32 = tpu.dynamic_rotate %12 by %c240_i32 dim 1 : vector<8x256xf32>, i32 -> vector<8x256xf32>
    %c56 = arith.constant 56 : index
    %c0_14 = arith.constant 0 : index
    %33 = vector.load %arg1[%c56, %c0_14] : memref<72x256xf32, #tpu.memory_space<vmem>>, vector<8x256xf32>
    %34 = arith.mulf %32, %33 : vector<8x256xf32>
    %c239_i32 = arith.constant 239 : i32
    %35 = tpu.dynamic_rotate %12 by %c239_i32 dim 1 : vector<8x256xf32>, i32 -> vector<8x256xf32>
    %c64 = arith.constant 64 : index
    %c0_15 = arith.constant 0 : index
    %36 = vector.load %arg1[%c64, %c0_15] : memref<72x256xf32, #tpu.memory_space<vmem>>, vector<8x256xf32>
    %37 = arith.mulf %35, %36 : vector<8x256xf32>
    %c0_16 = arith.constant 0 : index
    %c0_17 = arith.constant 0 : index
    %38 = vector.load %arg5[%c0_16, %c0_17] : memref<8x72xf32, #tpu.memory_space<vmem>>, vector<8x72xf32>
    %39 = tpu.concatenate %16, %19, %22, %25, %12, %28, %31, %34, %37 in 0 : vector<8x256xf32>, vector<8x256xf32>, vector<8x256xf32>, vector<8x256xf32>, vector<8x256xf32>, vector<8x256xf32>, vector<8x256xf32>, vector<8x256xf32>, vector<8x256xf32> -> vector<72x256xf32>
    %cst_18 = arith.constant dense<0.000000e+00> : vector<8x256xf32>
    %40 = tpu.matmul %38, %39, %cst_18 {dimension_numbers = #tpu.dot_dimension_numbers<[1], [0], [0], [1], [0, 0, 1, 1], [], []>} : vector<8x72xf32>, vector<72x256xf32>, vector<8x256xf32> -> vector<8x256xf32>
    %41 = arith.addf %40, %13 : vector<8x256xf32>
    %c0_19 = arith.constant 0 : index
    %c0_20 = arith.constant 0 : index
    %42 = vector.load %arg6[%c0_19, %c0_20] : memref<8x256xf32, #tpu.memory_space<vmem>>, vector<8x256xf32>
    %43 = arith.addf %41, %42 : vector<8x256xf32>
    %44 = arith.negf %43 : vector<8x256xf32>
    %45 = math.exp %44 : vector<8x256xf32>
    %cst_21 = arith.constant 1.000000e+00 : f32
    %46 = vector.broadcast %cst_21 : f32 to vector<8x256xf32>
    %47 = arith.addf %46, %45 : vector<8x256xf32>
    %48 = arith.divf %46, %47 : vector<8x256xf32>
    %49 = arith.mulf %43, %48 : vector<8x256xf32>
    %c0_22 = arith.constant 0 : index
    %c0_23 = arith.constant 0 : index
    %50 = vector.load %arg7[%c0_22, %c0_23] : memref<8x8xf32, #tpu.memory_space<vmem>>, vector<8x8xf32>
    %cst_24 = arith.constant dense<0.000000e+00> : vector<8x256xf32>
    %51 = tpu.matmul %50, %49, %cst_24 {dimension_numbers = #tpu.dot_dimension_numbers<[1], [0], [0], [1], [0, 0, 1, 1], [], []>} : vector<8x8xf32>, vector<8x256xf32>, vector<8x256xf32> -> vector<8x256xf32>
    %c0_25 = arith.constant 0 : index
    %c0_26 = arith.constant 0 : index
    %52 = vector.load %arg8[%c0_25, %c0_26] : memref<8x256xf32, #tpu.memory_space<vmem>>, vector<8x256xf32>
    %53 = arith.addf %51, %52 : vector<8x256xf32>
    %54 = arith.negf %53 : vector<8x256xf32>
    %55 = math.exp %54 : vector<8x256xf32>
    %cst_27 = arith.constant 1.000000e+00 : f32
    %56 = vector.broadcast %cst_27 : f32 to vector<8x256xf32>
    %57 = arith.addf %56, %55 : vector<8x256xf32>
    %58 = arith.divf %56, %57 : vector<8x256xf32>
    %59 = arith.mulf %53, %58 : vector<8x256xf32>
    %c17_i32_28 = arith.constant 17 : i32
    %60 = tpu.dynamic_rotate %59 by %c17_i32_28 dim 1 : vector<8x256xf32>, i32 -> vector<8x256xf32>
    %c0_29 = arith.constant 0 : index
    %c0_30 = arith.constant 0 : index
    %61 = vector.load %arg1[%c0_29, %c0_30] : memref<72x256xf32, #tpu.memory_space<vmem>>, vector<8x256xf32>
    %62 = arith.mulf %60, %61 : vector<8x256xf32>
    %c16_i32_31 = arith.constant 16 : i32
    %63 = tpu.dynamic_rotate %59 by %c16_i32_31 dim 1 : vector<8x256xf32>, i32 -> vector<8x256xf32>
    %c8_32 = arith.constant 8 : index
    %c0_33 = arith.constant 0 : index
    %64 = vector.load %arg1[%c8_32, %c0_33] : memref<72x256xf32, #tpu.memory_space<vmem>>, vector<8x256xf32>
    %65 = arith.mulf %63, %64 : vector<8x256xf32>
    %c15_i32_34 = arith.constant 15 : i32
    %66 = tpu.dynamic_rotate %59 by %c15_i32_34 dim 1 : vector<8x256xf32>, i32 -> vector<8x256xf32>
    %c16_35 = arith.constant 16 : index
    %c0_36 = arith.constant 0 : index
    %67 = vector.load %arg1[%c16_35, %c0_36] : memref<72x256xf32, #tpu.memory_space<vmem>>, vector<8x256xf32>
    %68 = arith.mulf %66, %67 : vector<8x256xf32>
    %c1_i32_37 = arith.constant 1 : i32
    %69 = tpu.dynamic_rotate %59 by %c1_i32_37 dim 1 : vector<8x256xf32>, i32 -> vector<8x256xf32>
    %c24_38 = arith.constant 24 : index
    %c0_39 = arith.constant 0 : index
    %70 = vector.load %arg1[%c24_38, %c0_39] : memref<72x256xf32, #tpu.memory_space<vmem>>, vector<8x256xf32>
    %71 = arith.mulf %69, %70 : vector<8x256xf32>
    %c255_i32_40 = arith.constant 255 : i32
    %72 = tpu.dynamic_rotate %59 by %c255_i32_40 dim 1 : vector<8x256xf32>, i32 -> vector<8x256xf32>
    %c40_41 = arith.constant 40 : index
    %c0_42 = arith.constant 0 : index
    %73 = vector.load %arg1[%c40_41, %c0_42] : memref<72x256xf32, #tpu.memory_space<vmem>>, vector<8x256xf32>
    %74 = arith.mulf %72, %73 : vector<8x256xf32>
    %c241_i32_43 = arith.constant 241 : i32
    %75 = tpu.dynamic_rotate %59 by %c241_i32_43 dim 1 : vector<8x256xf32>, i32 -> vector<8x256xf32>
    %c48_44 = arith.constant 48 : index
    %c0_45 = arith.constant 0 : index
    %76 = vector.load %arg1[%c48_44, %c0_45] : memref<72x256xf32, #tpu.memory_space<vmem>>, vector<8x256xf32>
    %77 = arith.mulf %75, %76 : vector<8x256xf32>
    %c240_i32_46 = arith.constant 240 : i32
    %78 = tpu.dynamic_rotate %59 by %c240_i32_46 dim 1 : vector<8x256xf32>, i32 -> vector<8x256xf32>
    %c56_47 = arith.constant 56 : index
    %c0_48 = arith.constant 0 : index
    %79 = vector.load %arg1[%c56_47, %c0_48] : memref<72x256xf32, #tpu.memory_space<vmem>>, vector<8x256xf32>
    %80 = arith.mulf %78, %79 : vector<8x256xf32>
    %c239_i32_49 = arith.constant 239 : i32
    %81 = tpu.dynamic_rotate %59 by %c239_i32_49 dim 1 : vector<8x256xf32>, i32 -> vector<8x256xf32>
    %c64_50 = arith.constant 64 : index
    %c0_51 = arith.constant 0 : index
    %82 = vector.load %arg1[%c64_50, %c0_51] : memref<72x256xf32, #tpu.memory_space<vmem>>, vector<8x256xf32>
    %83 = arith.mulf %81, %82 : vector<8x256xf32>
    %c0_52 = arith.constant 0 : index
    %c0_53 = arith.constant 0 : index
    %84 = vector.load %arg9[%c0_52, %c0_53] : memref<8x72xf32, #tpu.memory_space<vmem>>, vector<8x72xf32>
    %85 = tpu.concatenate %62, %65, %68, %71, %59, %74, %77, %80, %83 in 0 : vector<8x256xf32>, vector<8x256xf32>, vector<8x256xf32>, vector<8x256xf32>, vector<8x256xf32>, vector<8x256xf32>, vector<8x256xf32>, vector<8x256xf32>, vector<8x256xf32> -> vector<72x256xf32>
    %cst_54 = arith.constant dense<0.000000e+00> : vector<8x256xf32>
    %86 = tpu.matmul %84, %85, %cst_54 {dimension_numbers = #tpu.dot_dimension_numbers<[1], [0], [0], [1], [0, 0, 1, 1], [], []>} : vector<8x72xf32>, vector<72x256xf32>, vector<8x256xf32> -> vector<8x256xf32>
    %87 = arith.addf %86, %49 : vector<8x256xf32>
    %c0_55 = arith.constant 0 : index
    %c0_56 = arith.constant 0 : index
    %88 = vector.load %arg10[%c0_55, %c0_56] : memref<8x256xf32, #tpu.memory_space<vmem>>, vector<8x256xf32>
    %89 = arith.addf %87, %88 : vector<8x256xf32>
    %90 = arith.negf %89 : vector<8x256xf32>
    %91 = math.exp %90 : vector<8x256xf32>
    %cst_57 = arith.constant 1.000000e+00 : f32
    %92 = vector.broadcast %cst_57 : f32 to vector<8x256xf32>
    %93 = arith.addf %92, %91 : vector<8x256xf32>
    %94 = arith.divf %92, %93 : vector<8x256xf32>
    %95 = arith.mulf %89, %94 : vector<8x256xf32>
    %c0_58 = arith.constant 0 : index
    %c0_59 = arith.constant 0 : index
    %c0_60 = arith.constant 0 : index
    %96 = vector.load %arg11[%c0_58, %c0_59, %c0_60] : memref<2x8x256xf32, #tpu.memory_space<vmem>>, vector<1x8x256xf32>
    %97 = vector.shape_cast %96 : vector<1x8x256xf32> to vector<8x256xf32>
    %98 = vector.shape_cast %95 : vector<8x256xf32> to vector<1x8x256xf32>
    tpu.vector_store %arg11[%c0_58, %c0_59, %c0_60], %98 {strides = array<i32>} : memref<2x8x256xf32, #tpu.memory_space<vmem>>, vector<1x8x256xf32>,
    %c1 = arith.constant 1 : index
    %c0_61 = arith.constant 0 : index
    %c0_62 = arith.constant 0 : index
    %99 = vector.load %arg2[%c1, %c0_61, %c0_62] : memref<2x4x256xf32, #tpu.memory_space<vmem>>, vector<1x4x256xf32>
    %100 = vector.shape_cast %99 : vector<1x4x256xf32> to vector<4x256xf32>
    %c0_63 = arith.constant 0 : index
    %c0_64 = arith.constant 0 : index
    %101 = vector.load %arg3[%c0_63, %c0_64] : memref<16x4xf32, #tpu.memory_space<vmem>>, vector<16x4xf32>
    %cst_65 = arith.constant dense<0.000000e+00> : vector<16x256xf32>
    %102 = tpu.matmul %101, %100, %cst_65 {dimension_numbers = #tpu.dot_dimension_numbers<[1], [0], [0], [1], [0, 0, 1, 1], [], []>} : vector<16x4xf32>, vector<4x256xf32>, vector<16x256xf32> -> vector<16x256xf32>
    %103 = vector.extract_strided_slice %102 {offsets = [0, 0], sizes = [8, 256], strides = [1, 1]} : vector<16x256xf32> to vector<8x256xf32>
    %c0_66 = arith.constant 0 : index
    %c0_67 = arith.constant 0 : index
    %104 = vector.load %arg4[%c0_66, %c0_67] : memref<8x256xf32, #tpu.memory_space<vmem>>, vector<8x256xf32>
    %105 = arith.addf %103, %104 : vector<8x256xf32>
    %106 = arith.negf %105 : vector<8x256xf32>
    %107 = math.exp %106 : vector<8x256xf32>
    %cst_68 = arith.constant 1.000000e+00 : f32
    %108 = vector.broadcast %cst_68 : f32 to vector<8x256xf32>
    %109 = arith.addf %108, %107 : vector<8x256xf32>
    %110 = arith.divf %108, %109 : vector<8x256xf32>
    %111 = arith.mulf %105, %110 : vector<8x256xf32>
    %112 = vector.extract_strided_slice %102 {offsets = [8, 0], sizes = [8, 256], strides = [1, 1]} : vector<16x256xf32> to vector<8x256xf32>
    %c17_i32_69 = arith.constant 17 : i32
    %113 = tpu.dynamic_rotate %111 by %c17_i32_69 dim 1 : vector<8x256xf32>, i32 -> vector<8x256xf32>
    %c0_70 = arith.constant 0 : index
    %c0_71 = arith.constant 0 : index
    %114 = vector.load %arg1[%c0_70, %c0_71] : memref<72x256xf32, #tpu.memory_space<vmem>>, vector<8x256xf32>
    %115 = arith.mulf %113, %114 : vector<8x256xf32>
    %c16_i32_72 = arith.constant 16 : i32
    %116 = tpu.dynamic_rotate %111 by %c16_i32_72 dim 1 : vector<8x256xf32>, i32 -> vector<8x256xf32>
    %c8_73 = arith.constant 8 : index
    %c0_74 = arith.constant 0 : index
    %117 = vector.load %arg1[%c8_73, %c0_74] : memref<72x256xf32, #tpu.memory_space<vmem>>, vector<8x256xf32>
    %118 = arith.mulf %116, %117 : vector<8x256xf32>
    %c15_i32_75 = arith.constant 15 : i32
    %119 = tpu.dynamic_rotate %111 by %c15_i32_75 dim 1 : vector<8x256xf32>, i32 -> vector<8x256xf32>
    %c16_76 = arith.constant 16 : index
    %c0_77 = arith.constant 0 : index
    %120 = vector.load %arg1[%c16_76, %c0_77] : memref<72x256xf32, #tpu.memory_space<vmem>>, vector<8x256xf32>
    %121 = arith.mulf %119, %120 : vector<8x256xf32>
    %c1_i32_78 = arith.constant 1 : i32
    %122 = tpu.dynamic_rotate %111 by %c1_i32_78 dim 1 : vector<8x256xf32>, i32 -> vector<8x256xf32>
    %c24_79 = arith.constant 24 : index
    %c0_80 = arith.constant 0 : index
    %123 = vector.load %arg1[%c24_79, %c0_80] : memref<72x256xf32, #tpu.memory_space<vmem>>, vector<8x256xf32>
    %124 = arith.mulf %122, %123 : vector<8x256xf32>
    %c255_i32_81 = arith.constant 255 : i32
    %125 = tpu.dynamic_rotate %111 by %c255_i32_81 dim 1 : vector<8x256xf32>, i32 -> vector<8x256xf32>
    %c40_82 = arith.constant 40 : index
    %c0_83 = arith.constant 0 : index
    %126 = vector.load %arg1[%c40_82, %c0_83] : memref<72x256xf32, #tpu.memory_space<vmem>>, vector<8x256xf32>
    %127 = arith.mulf %125, %126 : vector<8x256xf32>
    %c241_i32_84 = arith.constant 241 : i32
    %128 = tpu.dynamic_rotate %111 by %c241_i32_84 dim 1 : vector<8x256xf32>, i32 -> vector<8x256xf32>
    %c48_85 = arith.constant 48 : index
    %c0_86 = arith.constant 0 : index
    %129 = vector.load %arg1[%c48_85, %c0_86] : memref<72x256xf32, #tpu.memory_space<vmem>>, vector<8x256xf32>
    %130 = arith.mulf %128, %129 : vector<8x256xf32>
    %c240_i32_87 = arith.constant 240 : i32
    %131 = tpu.dynamic_rotate %111 by %c240_i32_87 dim 1 : vector<8x256xf32>, i32 -> vector<8x256xf32>
    %c56_88 = arith.constant 56 : index
    %c0_89 = arith.constant 0 : index
    %132 = vector.load %arg1[%c56_88, %c0_89] : memref<72x256xf32, #tpu.memory_space<vmem>>, vector<8x256xf32>
    %133 = arith.mulf %131, %132 : vector<8x256xf32>
    %c239_i32_90 = arith.constant 239 : i32
    %134 = tpu.dynamic_rotate %111 by %c239_i32_90 dim 1 : vector<8x256xf32>, i32 -> vector<8x256xf32>
    %c64_91 = arith.constant 64 : index
    %c0_92 = arith.constant 0 : index
    %135 = vector.load %arg1[%c64_91, %c0_92] : memref<72x256xf32, #tpu.memory_space<vmem>>, vector<8x256xf32>
    %136 = arith.mulf %134, %135 : vector<8x256xf32>
    %c0_93 = arith.constant 0 : index
    %c0_94 = arith.constant 0 : index
    %137 = vector.load %arg5[%c0_93, %c0_94] : memref<8x72xf32, #tpu.memory_space<vmem>>, vector<8x72xf32>
    %138 = tpu.concatenate %115, %118, %121, %124, %111, %127, %130, %133, %136 in 0 : vector<8x256xf32>, vector<8x256xf32>, vector<8x256xf32>, vector<8x256xf32>, vector<8x256xf32>, vector<8x256xf32>, vector<8x256xf32>, vector<8x256xf32>, vector<8x256xf32> -> vector<72x256xf32>
    %cst_95 = arith.constant dense<0.000000e+00> : vector<8x256xf32>
    %139 = tpu.matmul %137, %138, %cst_95 {dimension_numbers = #tpu.dot_dimension_numbers<[1], [0], [0], [1], [0, 0, 1, 1], [], []>} : vector<8x72xf32>, vector<72x256xf32>, vector<8x256xf32> -> vector<8x256xf32>
    %140 = arith.addf %139, %112 : vector<8x256xf32>
    %c0_96 = arith.constant 0 : index
    %c0_97 = arith.constant 0 : index
    %141 = vector.load %arg6[%c0_96, %c0_97] : memref<8x256xf32, #tpu.memory_space<vmem>>, vector<8x256xf32>
    %142 = arith.addf %140, %141 : vector<8x256xf32>
    %143 = arith.negf %142 : vector<8x256xf32>
    %144 = math.exp %143 : vector<8x256xf32>
    %cst_98 = arith.constant 1.000000e+00 : f32
    %145 = vector.broadcast %cst_98 : f32 to vector<8x256xf32>
    %146 = arith.addf %145, %144 : vector<8x256xf32>
    %147 = arith.divf %145, %146 : vector<8x256xf32>
    %148 = arith.mulf %142, %147 : vector<8x256xf32>
    %c0_99 = arith.constant 0 : index
    %c0_100 = arith.constant 0 : index
    %149 = vector.load %arg7[%c0_99, %c0_100] : memref<8x8xf32, #tpu.memory_space<vmem>>, vector<8x8xf32>
    %cst_101 = arith.constant dense<0.000000e+00> : vector<8x256xf32>
    %150 = tpu.matmul %149, %148, %cst_101 {dimension_numbers = #tpu.dot_dimension_numbers<[1], [0], [0], [1], [0, 0, 1, 1], [], []>} : vector<8x8xf32>, vector<8x256xf32>, vector<8x256xf32> -> vector<8x256xf32>
    %c0_102 = arith.constant 0 : index
    %c0_103 = arith.constant 0 : index
    %151 = vector.load %arg8[%c0_102, %c0_103] : memref<8x256xf32, #tpu.memory_space<vmem>>, vector<8x256xf32>
    %152 = arith.addf %150, %151 : vector<8x256xf32>
    %153 = arith.negf %152 : vector<8x256xf32>
    %154 = math.exp %153 : vector<8x256xf32>
    %cst_104 = arith.constant 1.000000e+00 : f32
    %155 = vector.broadcast %cst_104 : f32 to vector<8x256xf32>
    %156 = arith.addf %155, %154 : vector<8x256xf32>
    %157 = arith.divf %155, %156 : vector<8x256xf32>
    %158 = arith.mulf %152, %157 : vector<8x256xf32>
    %c17_i32_105 = arith.constant 17 : i32
    %159 = tpu.dynamic_rotate %158 by %c17_i32_105 dim 1 : vector<8x256xf32>, i32 -> vector<8x256xf32>
    %c0_106 = arith.constant 0 : index
    %c0_107 = arith.constant 0 : index
    %160 = vector.load %arg1[%c0_106, %c0_107] : memref<72x256xf32, #tpu.memory_space<vmem>>, vector<8x256xf32>
    %161 = arith.mulf %159, %160 : vector<8x256xf32>
    %c16_i32_108 = arith.constant 16 : i32
    %162 = tpu.dynamic_rotate %158 by %c16_i32_108 dim 1 : vector<8x256xf32>, i32 -> vector<8x256xf32>
    %c8_109 = arith.constant 8 : index
    %c0_110 = arith.constant 0 : index
    %163 = vector.load %arg1[%c8_109, %c0_110] : memref<72x256xf32, #tpu.memory_space<vmem>>, vector<8x256xf32>
    %164 = arith.mulf %162, %163 : vector<8x256xf32>
    %c15_i32_111 = arith.constant 15 : i32
    %165 = tpu.dynamic_rotate %158 by %c15_i32_111 dim 1 : vector<8x256xf32>, i32 -> vector<8x256xf32>
    %c16_112 = arith.constant 16 : index
    %c0_113 = arith.constant 0 : index
    %166 = vector.load %arg1[%c16_112, %c0_113] : memref<72x256xf32, #tpu.memory_space<vmem>>, vector<8x256xf32>
    %167 = arith.mulf %165, %166 : vector<8x256xf32>
    %c1_i32_114 = arith.constant 1 : i32
    %168 = tpu.dynamic_rotate %158 by %c1_i32_114 dim 1 : vector<8x256xf32>, i32 -> vector<8x256xf32>
    %c24_115 = arith.constant 24 : index
    %c0_116 = arith.constant 0 : index
    %169 = vector.load %arg1[%c24_115, %c0_116] : memref<72x256xf32, #tpu.memory_space<vmem>>, vector<8x256xf32>
    %170 = arith.mulf %168, %169 : vector<8x256xf32>
    %c255_i32_117 = arith.constant 255 : i32
    %171 = tpu.dynamic_rotate %158 by %c255_i32_117 dim 1 : vector<8x256xf32>, i32 -> vector<8x256xf32>
    %c40_118 = arith.constant 40 : index
    %c0_119 = arith.constant 0 : index
    %172 = vector.load %arg1[%c40_118, %c0_119] : memref<72x256xf32, #tpu.memory_space<vmem>>, vector<8x256xf32>
    %173 = arith.mulf %171, %172 : vector<8x256xf32>
    %c241_i32_120 = arith.constant 241 : i32
    %174 = tpu.dynamic_rotate %158 by %c241_i32_120 dim 1 : vector<8x256xf32>, i32 -> vector<8x256xf32>
    %c48_121 = arith.constant 48 : index
    %c0_122 = arith.constant 0 : index
    %175 = vector.load %arg1[%c48_121, %c0_122] : memref<72x256xf32, #tpu.memory_space<vmem>>, vector<8x256xf32>
    %176 = arith.mulf %174, %175 : vector<8x256xf32>
    %c240_i32_123 = arith.constant 240 : i32
    %177 = tpu.dynamic_rotate %158 by %c240_i32_123 dim 1 : vector<8x256xf32>, i32 -> vector<8x256xf32>
    %c56_124 = arith.constant 56 : index
    %c0_125 = arith.constant 0 : index
    %178 = vector.load %arg1[%c56_124, %c0_125] : memref<72x256xf32, #tpu.memory_space<vmem>>, vector<8x256xf32>
    %179 = arith.mulf %177, %178 : vector<8x256xf32>
    %c239_i32_126 = arith.constant 239 : i32
    %180 = tpu.dynamic_rotate %158 by %c239_i32_126 dim 1 : vector<8x256xf32>, i32 -> vector<8x256xf32>
    %c64_127 = arith.constant 64 : index
    %c0_128 = arith.constant 0 : index
    %181 = vector.load %arg1[%c64_127, %c0_128] : memref<72x256xf32, #tpu.memory_space<vmem>>, vector<8x256xf32>
    %182 = arith.mulf %180, %181 : vector<8x256xf32>
    %c0_129 = arith.constant 0 : index
    %c0_130 = arith.constant 0 : index
    %183 = vector.load %arg9[%c0_129, %c0_130] : memref<8x72xf32, #tpu.memory_space<vmem>>, vector<8x72xf32>
    %184 = tpu.concatenate %161, %164, %167, %170, %158, %173, %176, %179, %182 in 0 : vector<8x256xf32>, vector<8x256xf32>, vector<8x256xf32>, vector<8x256xf32>, vector<8x256xf32>, vector<8x256xf32>, vector<8x256xf32>, vector<8x256xf32>, vector<8x256xf32> -> vector<72x256xf32>
    %cst_131 = arith.constant dense<0.000000e+00> : vector<8x256xf32>
    %185 = tpu.matmul %183, %184, %cst_131 {dimension_numbers = #tpu.dot_dimension_numbers<[1], [0], [0], [1], [0, 0, 1, 1], [], []>} : vector<8x72xf32>, vector<72x256xf32>, vector<8x256xf32> -> vector<8x256xf32>
    %186 = arith.addf %185, %148 : vector<8x256xf32>
    %c0_132 = arith.constant 0 : index
    %c0_133 = arith.constant 0 : index
    %187 = vector.load %arg10[%c0_132, %c0_133] : memref<8x256xf32, #tpu.memory_space<vmem>>, vector<8x256xf32>
    %188 = arith.addf %186, %187 : vector<8x256xf32>
    %189 = arith.negf %188 : vector<8x256xf32>
    %190 = math.exp %189 : vector<8x256xf32>
    %cst_134 = arith.constant 1.000000e+00 : f32
    %191 = vector.broadcast %cst_134 : f32 to vector<8x256xf32>
    %192 = arith.addf %191, %190 : vector<8x256xf32>
    %193 = arith.divf %191, %192 : vector<8x256xf32>
    %194 = arith.mulf %188, %193 : vector<8x256xf32>
    %c1_135 = arith.constant 1 : index
    %c0_136 = arith.constant 0 : index
    %c0_137 = arith.constant 0 : index
    %195 = vector.load %arg11[%c1_135, %c0_136, %c0_137] : memref<2x8x256xf32, #tpu.memory_space<vmem>>, vector<1x8x256xf32>
    %196 = vector.shape_cast %195 : vector<1x8x256xf32> to vector<8x256xf32>
    %197 = vector.shape_cast %194 : vector<8x256xf32> to vector<1x8x256xf32>
    tpu.vector_store %arg11[%c1_135, %c0_136, %c0_137], %197 {strides = array<i32>} : memref<2x8x256xf32, #tpu.memory_space<vmem>>, vector<1x8x256xf32>,
    return
  }
  func.func @transform_0(%arg0: i32) -> (i32, i32) {
    %c0_i32 = arith.constant 0 : i32
    %c0_i32_0 = arith.constant 0 : i32
    %c0_i32_1 = arith.constant 0 : i32
    return %c0_i32, %c0_i32_0 : i32, i32
  }
  func.func @transform_1(%arg0: i32) -> (i32, i32, i32) {
    %c0_i32 = arith.constant 0 : i32
    %c0_i32_0 = arith.constant 0 : i32
    %c0_i32_1 = arith.constant 0 : i32
    %c0_i32_2 = arith.constant 0 : i32
    return %c0_i32, %c0_i32_0, %c0_i32_1 : i32, i32, i32
  }
  func.func @transform_2(%arg0: i32) -> (i32, i32) {
    %c0_i32 = arith.constant 0 : i32
    %c0_i32_0 = arith.constant 0 : i32
    %c0_i32_1 = arith.constant 0 : i32
    return %c0_i32, %c0_i32_0 : i32, i32
  }
  func.func @transform_3(%arg0: i32) -> (i32, i32) {
    %c0_i32 = arith.constant 0 : i32
    %c0_i32_0 = arith.constant 0 : i32
    %c0_i32_1 = arith.constant 0 : i32
    return %c0_i32, %c0_i32_0 : i32, i32
  }
  func.func @transform_4(%arg0: i32) -> (i32, i32) {
    %c0_i32 = arith.constant 0 : i32
    %c0_i32_0 = arith.constant 0 : i32
    %c0_i32_1 = arith.constant 0 : i32
    return %c0_i32, %c0_i32_0 : i32, i32
  }
  func.func @transform_5(%arg0: i32) -> (i32, i32) {
    %c0_i32 = arith.constant 0 : i32
    %c0_i32_0 = arith.constant 0 : i32
    %c0_i32_1 = arith.constant 0 : i32
    return %c0_i32, %c0_i32_0 : i32, i32
  }
  func.func @transform_6(%arg0: i32) -> (i32, i32) {
    %c0_i32 = arith.constant 0 : i32
    %c0_i32_0 = arith.constant 0 : i32
    %c0_i32_1 = arith.constant 0 : i32
    return %c0_i32, %c0_i32_0 : i32, i32
  }
  func.func @transform_7(%arg0: i32) -> (i32, i32) {
    %c0_i32 = arith.constant 0 : i32
    %c0_i32_0 = arith.constant 0 : i32
    %c0_i32_1 = arith.constant 0 : i32
    return %c0_i32, %c0_i32_0 : i32, i32
  }
  func.func @transform_8(%arg0: i32) -> (i32, i32) {
    %c0_i32 = arith.constant 0 : i32
    %c0_i32_0 = arith.constant 0 : i32
    %c0_i32_1 = arith.constant 0 : i32
    return %c0_i32, %c0_i32_0 : i32, i32
  }
  func.func @transform_9(%arg0: i32) -> (i32, i32) {
    %c0_i32 = arith.constant 0 : i32
    %c0_i32_0 = arith.constant 0 : i32
    %c0_i32_1 = arith.constant 0 : i32
    return %c0_i32, %c0_i32_0 : i32, i32
  }
  func.func @transform_10(%arg0: i32) -> (i32, i32, i32) {
    %c0_i32 = arith.constant 0 : i32
    %c0_i32_0 = arith.constant 0 : i32
    %c0_i32_1 = arith.constant 0 : i32
    %c0_i32_2 = arith.constant 0 : i32
    return %c0_i32, %c0_i32_0, %c0_i32_1 : i32, i32, i32
  }
}

</mosaic_0001>

<llo_original>
// kernel: _lambda_.1
$region0: #{_lambda_.1}
  #allocation0 [shape = 'u32[]', space=smem, size = 0x4, offset = 0x4, fixed_abs, tag = 'smem constant byte address 0x4 - core index']
  #allocation1 [shape = 'u32[144,128]{1,0:T(1,128)}', space=vmem, size = 0x12000, scoped, tag = 'internal scratch']
  %s0 = inlined_call_operand.vmem [shape: f32[72,256], index: 0, kind: input, shape index: {}]
  %s1 = inlined_call_operand.vmem [shape: f32[2,4,256], index: 1, kind: input, shape index: {}]
  %s2 = inlined_call_operand.vmem [shape: f32[16,4], index: 2, kind: input, shape index: {}]
  %s3 = inlined_call_operand.vmem [shape: f32[8,256], index: 3, kind: input, shape index: {}]
  %s4 = inlined_call_operand.vmem [shape: f32[8,72], index: 4, kind: input, shape index: {}]
  %s5 = inlined_call_operand.vmem [shape: f32[8,256], index: 5, kind: input, shape index: {}]
  %s6 = inlined_call_operand.vmem [shape: f32[8,8], index: 6, kind: input, shape index: {}]
  %s7 = inlined_call_operand.vmem [shape: f32[8,256], index: 7, kind: input, shape index: {}]
  %s8 = inlined_call_operand.vmem [shape: f32[8,72], index: 8, kind: input, shape index: {}]
  %s9 = inlined_call_operand.vmem [shape: f32[8,256], index: 9, kind: input, shape index: {}]
  %s10 = inlined_call_operand.vmem [shape: f32[2,8,256], index: 10, kind: output, shape index: {}]
  %s11 = sld [smem:[#allocation0]]
  $region50: #{_lambda_.1} parent=0
    _
  %s13 = ssub.s32 1, %s11
  %s14 = scalar_select 0, %s13, %s11
  // Predicated region
  $region2: #{_lambda_.1} parent=0 // pred_check
    _
  $region3: #{_lambda_.1} parent=0 // pred_check_branch
    %16 = sbr.rel (0) target = $region5
  $region4: #{_lambda_.1} parent=0 // pred_region
    _
  $region5: #{_lambda_.1} parent=0 // pred_fallthru
    _
  // Predicated region
  $region6: #{_lambda_.1} parent=0 // pred_check
    _
  $region7: #{_lambda_.1} parent=0 // pred_check_branch
    %18 = sbr.rel (0) target = $region9
  $region8: #{_lambda_.1} parent=0 // pred_region
    _
  $region9: #{_lambda_.1} parent=0 // pred_fallthru
    _
  // Predicated region
  $region10: #{_lambda_.1} parent=0 // pred_check
    _
  $region11: #{_lambda_.1} parent=0 // pred_check_branch
    %20 = sbr.rel (0) target = $region13
  $region12: #{_lambda_.1} parent=0 // pred_region
    _
  $region13: #{_lambda_.1} parent=0 // pred_fallthru
    _
  // Predicated region
  $region14: #{_lambda_.1} parent=0 // pred_check
    _
  $region15: #{_lambda_.1} parent=0 // pred_check_branch
    %22 = sbr.rel (0) target = $region17
  $region16: #{_lambda_.1} parent=0 // pred_region
    _
  $region17: #{_lambda_.1} parent=0 // pred_fallthru
    _
  // Predicated region
  $region18: #{_lambda_.1} parent=0 // pred_check
    _
  $region19: #{_lambda_.1} parent=0 // pred_check_branch
    %24 = sbr.rel (0) target = $region21
  $region20: #{_lambda_.1} parent=0 // pred_region
    _
  $region21: #{_lambda_.1} parent=0 // pred_fallthru
    _
  // Predicated region
  $region22: #{_lambda_.1} parent=0 // pred_check
    _
  $region23: #{_lambda_.1} parent=0 // pred_check_branch
    %26 = sbr.rel (0) target = $region25
  $region24: #{_lambda_.1} parent=0 // pred_region
    _
  $region25: #{_lambda_.1} parent=0 // pred_fallthru
    _
  // Predicated region
  $region26: #{_lambda_.1} parent=0 // pred_check
    _
  $region27: #{_lambda_.1} parent=0 // pred_check_branch
    %28 = sbr.rel (0) target = $region29
  $region28: #{_lambda_.1} parent=0 // pred_region
    _
  $region29: #{_lambda_.1} parent=0 // pred_fallthru
    _
  // Predicated region
  $region30: #{_lambda_.1} parent=0 // pred_check
    _
  $region31: #{_lambda_.1} parent=0 // pred_check_branch
    %30 = sbr.rel (0) target = $region33
  $region32: #{_lambda_.1} parent=0 // pred_region
    _
  $region33: #{_lambda_.1} parent=0 // pred_fallthru
    _
  // Predicated region
  $region34: #{_lambda_.1} parent=0 // pred_check
    _
  $region35: #{_lambda_.1} parent=0 // pred_check_branch
    %32 = sbr.rel (0) target = $region37
  $region36: #{_lambda_.1} parent=0 // pred_region
    _
  $region37: #{_lambda_.1} parent=0 // pred_fallthru
    _
  // Predicated region
  $region38: #{_lambda_.1} parent=0 // pred_check
    _
  $region39: #{_lambda_.1} parent=0 // pred_check_branch
    %34 = sbr.rel (0) target = $region41
  $region40: #{_lambda_.1} parent=0 // pred_region
    _
  $region41: #{_lambda_.1} parent=0 // pred_fallthru
    _
  %v35 = vld [vmem:[%s1] sm:$0xff]
  %v36 = vld [vmem:[%s2] sm:$0xff]
  %v37 = vld [vmem:[%s2 + $0x8] sm:$0xff]
  %v39 = vcombine.high %v35, %v35
  %vm40 = vcmask 31744
  %v42 = vsel %vm40, %v36, 0
  %v45 = vsel %vm40, %v37, 0
  %vm47 = vcmask 1043456
  %v48 = vsel %vm47, %v35, 0
  %v50 = vsel %vm47, %v39, 0
  %52 = vmatprep.subr.mxu0 0.0
  %53 = vmatpush1.msra.mxu0 0.0
  %54 = vmatprep.subr.mxu0 0.0
  %55 = vmatpush1.msra.mxu0 0.0
  %56 = vmatprep.subr.mxu0 0.0
  %57 = vmatpush1.msra.mxu0 0.0
  %58 = vmatprep.subr.mxu0 0.0
  %59 = vmatpush1.msra.mxu0 0.0
  %60 = vmatprep.subr.mxu0 0.0
  %61 = vmatpush1.msra.mxu0 0.0
  %62 = vmatprep.subr.mxu0 0.0
  %63 = vmatpush1.msra.mxu0 0.0
  %64 = vmatprep.subr.mxu0 0.0
  %65 = vmatpush1.msra.mxu0 0.0
  %66 = vmatprep.subr.mxu0 0.0
  %67 = vmatpush1.msra.mxu0 0.0
  %68 = vmatprep.subr.mxu0 0.0
  %69 = vmatpush1.msra.mxu0 0.0
  %70 = vmatprep.subr.mxu0 0.0
  %71 = vmatpush1.msra.mxu0 0.0
  %72 = vmatprep.subr.mxu0 0.0
  %73 = vmatpush1.msra.mxu0 0.0
  %74 = vmatprep.subr.mxu0 0.0
  %75 = vmatpush1.msra.mxu0 0.0
  %76 = vmatprep.subr.mxu0 0.0
  %77 = vmatpush1.msra.mxu0 0.0
  %78 = vmatprep.subr.mxu0 0.0
  %79 = vmatpush1.msra.mxu0 0.0
  %80 = vmatprep.subr.mxu0 0.0
  %81 = vmatpush1.msra.mxu0 0.0
  %82 = vmatprep.subr.mxu0 %v50
  %83 = vmatpush1.msra.mxu0 %v48
  %84 = vmatprep.subr.mxu0 0.0
  %85 = vmatpush2.msra.mxu0 0.0
  %86 = vmatprep.subr.mxu0 0.0
  %87 = vmatpush2.msra.mxu0 0.0
  %88 = vmatprep.subr.mxu0 0.0
  %89 = vmatpush2.msra.mxu0 0.0
  %90 = vmatprep.subr.mxu0 0.0
  %91 = vmatpush2.msra.mxu0 0.0
  %92 = vmatprep.subr.mxu0 0.0
  %93 = vmatpush2.msra.mxu0 0.0
  %94 = vmatprep.subr.mxu0 0.0
  %95 = vmatpush2.msra.mxu0 0.0
  %96 = vmatprep.subr.mxu0 0.0
  %97 = vmatpush2.msra.mxu0 0.0
  %98 = vmatprep.subr.mxu0 0.0
  %99 = vmatpush2.msra.mxu0 0.0
  %100 = vmatprep.subr.mxu0 0.0
  %101 = vmatpush2.msra.mxu0 0.0
  %102 = vmatprep.subr.mxu0 0.0
  %103 = vmatpush2.msra.mxu0 0.0
  %104 = vmatprep.subr.mxu0 0.0
  %105 = vmatpush2.msra.mxu0 0.0
  %106 = vmatprep.subr.mxu0 0.0
  %107 = vmatpush2.msra.mxu0 0.0
  %108 = vmatprep.subr.mxu0 0.0
  %109 = vmatpush2.msra.mxu0 0.0
  %110 = vmatprep.subr.mxu0 0.0
  %111 = vmatpush2.msra.mxu0 0.0
  %112 = vmatprep.subr.mxu0 0.0
  %113 = vmatpush2.msra.mxu0 0.0
  %114 = vmatprep.subr.mxu0 0.0
  %115 = vmatpush2.msra.mxu0 0.0
  %116 = vmatprep.mubr.f32.mxu0 0.0
  %117 = vmatmul.mubr.f32.gmra.mxu0 %v42
  %v118 = vpop.f32.mrf.mxu0
  %v119 = vadd.f32 0.0, %v118
  %v120 = vpop.f32.mrf.mxu0
  %v121 = vadd.f32 0.0, %v120
  %122 = vmatprep.mubr.f32.mxu0 0.0
  %123 = vmatmul.mubr.f32.gmra.mxu0 %v45
  %v124 = vpop.f32.mrf.mxu0
  %v125 = vadd.f32 0.0, %v124
  %v126 = vpop.f32.mrf.mxu0
  %v127 = vadd.f32 0.0, %v126
  %128 = vdwg.mxu0
  %v129 = vld [vmem:[%s3] sm:$0xff]
  %v130 = vld [vmem:[%s3 + $0x8] sm:$0xff]
  %v131 = vadd.f32 %v119, %v129
  %v132 = vadd.f32 %v121, %v130
  %v133 = vxor.u32 %v131, 2147483648
  %v134 = vxor.u32 %v132, 2147483648
  %v135 = vmul.f32 %v133, 1.442695
  %v136 = vpow.pop %v135
  %v137 = vmul.f32 %v134, 1.442695
  %v138 = vpow.pop %v137
  %v139 = vadd.f32 %v136, 1.0
  %v140 = vadd.f32 %v138, 1.0
  %v141 = vrcp.pop %v139
  %v142 = vmul.f32 1.0, %v141
  %v143 = vrcp.pop %v140
  %v144 = vmul.f32 1.0, %v143
  %v145 = vmul.f32 %v131, %v142
  %v146 = vmul.f32 %v132, %v144
  %147 = vrot.lane.b32.xlu0 %v145, 17
  %v148 = vpop.permute.xlu0 %147
  %149 = vrot.lane.b32.xlu0 %v146, 17
  %v150 = vpop.permute.xlu0 %149
  %v151 = vlaneseq
  %v152 = vand.u32 %v151, 127
  %vm153 = vcmp.lt.s32.totalorder %v152, 17
  %v154 = vsel %vm153, %v148, %v150
  %v155 = vsel %vm153, %v150, %v148
  %v156 = vld [vmem:[%s0] sm:$0xff]
  %v157 = vld [vmem:[%s0 + $0x8] sm:$0xff]
  %v158 = vmul.f32 %v155, %v156
  %v159 = vmul.f32 %v154, %v157
  %160 = vrot.lane.b32.xlu0 %v145, 16
  %v161 = vpop.permute.xlu0 %160
  %162 = vrot.lane.b32.xlu0 %v146, 16
  %v163 = vpop.permute.xlu0 %162
  %vm164 = vcmp.lt.s32.totalorder %v152, 16
  %v165 = vsel %vm164, %v161, %v163
  %v166 = vsel %vm164, %v163, %v161
  %v167 = vld [vmem:[%s0 + $0x10] sm:$0xff]
  %v168 = vld [vmem:[%s0 + $0x18] sm:$0xff]
  %v169 = vmul.f32 %v166, %v167
  %v170 = vmul.f32 %v165, %v168
  %171 = vrot.lane.b32.xlu0 %v145, 15
  %v172 = vpop.permute.xlu0 %171
  %173 = vrot.lane.b32.xlu0 %v146, 15
  %v174 = vpop.permute.xlu0 %173
  %vm175 = vcmp.lt.s32.totalorder %v152, 15
  %v176 = vsel %vm175, %v172, %v174
  %v177 = vsel %vm175, %v174, %v172
  %v178 = vld [vmem:[%s0 + $0x20] sm:$0xff]
  %v179 = vld [vmem:[%s0 + $0x28] sm:$0xff]
  %v180 = vmul.f32 %v177, %v178
  %v181 = vmul.f32 %v176, %v179
  %182 = vrot.lane.b32.xlu0 %v145, 1
  %v183 = vpop.permute.xlu0 %182
  %184 = vrot.lane.b32.xlu0 %v146, 1
  %v185 = vpop.permute.xlu0 %184
  %vm186 = vcmp.lt.s32.totalorder %v152, 1
  %v187 = vsel %vm186, %v183, %v185
  %v188 = vsel %vm186, %v185, %v183
  %v189 = vld [vmem:[%s0 + $0x30] sm:$0xff]
  %v190 = vld [vmem:[%s0 + $0x38] sm:$0xff]
  %v191 = vmul.f32 %v188, %v189
  %v192 = vmul.f32 %v187, %v190
  %193 = vrot.lane.b32.xlu0 %v145, 127
  %v194 = vpop.permute.xlu0 %193
  %195 = vrot.lane.b32.xlu0 %v146, 127
  %v196 = vpop.permute.xlu0 %195
  %vm197 = vcmp.lt.s32.totalorder %v152, 127
  %v198 = vsel %vm197, %v194, %v196
  %v199 = vsel %vm197, %v196, %v194
  %v200 = vld [vmem:[%s0 + $0x50] sm:$0xff]
  %v201 = vld [vmem:[%s0 + $0x58] sm:$0xff]
  %v202 = vmul.f32 %v198, %v200
  %v203 = vmul.f32 %v199, %v201
  %204 = vrot.lane.b32.xlu0 %v145, 113
  %v205 = vpop.permute.xlu0 %204
  %206 = vrot.lane.b32.xlu0 %v146, 113
  %v207 = vpop.permute.xlu0 %206
  %vm208 = vcmp.lt.s32.totalorder %v152, 113
  %v209 = vsel %vm208, %v205, %v207
  %v210 = vsel %vm208, %v207, %v205
  %v211 = vld [vmem:[%s0 + $0x60] sm:$0xff]
  %v212 = vld [vmem:[%s0 + $0x68] sm:$0xff]
  %v213 = vmul.f32 %v209, %v211
  %v214 = vmul.f32 %v210, %v212
  %215 = vrot.lane.b32.xlu0 %v145, 112
  %v216 = vpop.permute.xlu0 %215
  %217 = vrot.lane.b32.xlu0 %v146, 112
  %v218 = vpop.permute.xlu0 %217
  %vm219 = vcmp.lt.s32.totalorder %v152, 112
  %v220 = vsel %vm219, %v216, %v218
  %v221 = vsel %vm219, %v218, %v216
  %v222 = vld [vmem:[%s0 + $0x70] sm:$0xff]
  %v223 = vld [vmem:[%s0 + $0x78] sm:$0xff]
  %v224 = vmul.f32 %v220, %v222
  %v225 = vmul.f32 %v221, %v223
  %226 = vrot.lane.b32.xlu0 %v145, 111
  %v227 = vpop.permute.xlu0 %226
  %228 = vrot.lane.b32.xlu0 %v146, 111
  %v229 = vpop.permute.xlu0 %228
  %vm230 = vcmp.lt.s32.totalorder %v152, 111
  %v231 = vsel %vm230, %v227, %v229
  %v232 = vsel %vm230, %v229, %v227
  %v233 = vld [vmem:[%s0 + $0x80] sm:$0xff]
  %v234 = vld [vmem:[%s0 + $0x88] sm:$0xff]
  %v235 = vmul.f32 %v231, %v233
  %v236 = vmul.f32 %v232, %v234
  %v237 = vld [vmem:[%s4] sm:$0xff]
  %vm238 = vcmask 588800
  %v240 = vsel %vm238, %v237, 0
  %242 = vmatprep.subr.mxu0 0.0
  %243 = vmatpush1.msra.mxu0 0.0
  %244 = vmatprep.subr.mxu0 0.0
  %245 = vmatpush1.msra.mxu0 0.0
  %246 = vmatprep.subr.mxu0 0.0
  %247 = vmatpush1.msra.mxu0 0.0
  %248 = vmatprep.subr.mxu0 0.0
  %249 = vmatpush1.msra.mxu0 0.0
  %250 = vmatprep.subr.mxu0 0.0
  %251 = vmatpush1.msra.mxu0 0.0
  %252 = vmatprep.subr.mxu0 0.0
  %253 = vmatpush1.msra.mxu0 0.0
  %254 = vmatprep.subr.mxu0 0.0
  %255 = vmatpush1.msra.mxu0 0.0
  %256 = vmatprep.subr.mxu0 %v236
  %257 = vmatpush1.msra.mxu0 %v235
  %258 = vmatprep.subr.mxu0 %v225
  %259 = vmatpush1.msra.mxu0 %v224
  %260 = vmatprep.subr.mxu0 %v214
  %261 = vmatpush1.msra.mxu0 %v213
  %262 = vmatprep.subr.mxu0 %v203
  %263 = vmatpush1.msra.mxu0 %v202
  %264 = vmatprep.subr.mxu0 %v146
  %265 = vmatpush1.msra.mxu0 %v145
  %266 = vmatprep.subr.mxu0 %v192
  %267 = vmatpush1.msra.mxu0 %v191
  %268 = vmatprep.subr.mxu0 %v181
  %269 = vmatpush1.msra.mxu0 %v180
  %270 = vmatprep.subr.mxu0 %v170
  %271 = vmatpush1.msra.mxu0 %v169
  %272 = vmatprep.subr.mxu0 %v159
  %273 = vmatpush1.msra.mxu0 %v158
  %274 = vmatprep.subr.mxu0 0.0
  %275 = vmatpush2.msra.mxu0 0.0
  %276 = vmatprep.subr.mxu0 0.0
  %277 = vmatpush2.msra.mxu0 0.0
  %278 = vmatprep.subr.mxu0 0.0
  %279 = vmatpush2.msra.mxu0 0.0
  %280 = vmatprep.subr.mxu0 0.0
  %281 = vmatpush2.msra.mxu0 0.0
  %282 = vmatprep.subr.mxu0 0.0
  %283 = vmatpush2.msra.mxu0 0.0
  %284 = vmatprep.subr.mxu0 0.0
  %285 = vmatpush2.msra.mxu0 0.0
  %286 = vmatprep.subr.mxu0 0.0
  %287 = vmatpush2.msra.mxu0 0.0
  %288 = vmatprep.subr.mxu0 0.0
  %289 = vmatpush2.msra.mxu0 0.0
  %290 = vmatprep.subr.mxu0 0.0
  %291 = vmatpush2.msra.mxu0 0.0
  %292 = vmatprep.subr.mxu0 0.0
  %293 = vmatpush2.msra.mxu0 0.0
  %294 = vmatprep.subr.mxu0 0.0
  %295 = vmatpush2.msra.mxu0 0.0
  %296 = vmatprep.subr.mxu0 0.0
  %297 = vmatpush2.msra.mxu0 0.0
  %298 = vmatprep.subr.mxu0 0.0
  %299 = vmatpush2.msra.mxu0 0.0
  %300 = vmatprep.subr.mxu0 0.0
  %301 = vmatpush2.msra.mxu0 0.0
  %302 = vmatprep.subr.mxu0 0.0
  %303 = vmatpush2.msra.mxu0 0.0
  %304 = vmatprep.subr.mxu0 0.0
  %305 = vmatpush2.msra.mxu0 0.0
  %306 = vmatprep.mubr.f32.mxu0 0.0
  %307 = vmatmul.mubr.f32.gmra.mxu0 %v240
  %v308 = vpop.f32.mrf.mxu0
  %v309 = vadd.f32 %v125, %v308
  %v310 = vpop.f32.mrf.mxu0
  %v311 = vadd.f32 %v127, %v310
  %312 = vdwg.mxu0
  %v313 = vld [vmem:[%s5] sm:$0xff]
  %v314 = vld [vmem:[%s5 + $0x8] sm:$0xff]
  %v315 = vadd.f32 %v309, %v313
  %v316 = vadd.f32 %v311, %v314
  %v317 = vxor.u32 %v315, 2147483648
  %v318 = vxor.u32 %v316, 2147483648
  %v319 = vmul.f32 %v317, 1.442695
  %v320 = vpow.pop %v319
  %v321 = vmul.f32 %v318, 1.442695
  %v322 = vpow.pop %v321
  %v323 = vadd.f32 %v320, 1.0
  %v324 = vadd.f32 %v322, 1.0
  %v325 = vrcp.pop %v323
  %v326 = vmul.f32 1.0, %v325
  %v327 = vrcp.pop %v324
  %v328 = vmul.f32 1.0, %v327
  %v329 = vmul.f32 %v315, %v326
  %v330 = vmul.f32 %v316, %v328
  %v331 = vld [vmem:[%s6] sm:$0xff]
  %v332 = vld [vmem:[%s7] sm:$0xff]
  %v333 = vld [vmem:[%s7 + $0x8] sm:$0xff]
  %vm334 = vcmask 64512
  %v336 = vsel %vm334, %v331, 0
  %338 = vmatprep.subr.mxu0 0.0
  %339 = vmatpush1.msra.mxu0 0.0
  %340 = vmatprep.subr.mxu0 0.0
  %341 = vmatpush1.msra.mxu0 0.0
  %342 = vmatprep.subr.mxu0 0.0
  %343 = vmatpush1.msra.mxu0 0.0
  %344 = vmatprep.subr.mxu0 0.0
  %345 = vmatpush1.msra.mxu0 0.0
  %346 = vmatprep.subr.mxu0 0.0
  %347 = vmatpush1.msra.mxu0 0.0
  %348 = vmatprep.subr.mxu0 0.0
  %349 = vmatpush1.msra.mxu0 0.0
  %350 = vmatprep.subr.mxu0 0.0
  %351 = vmatpush1.msra.mxu0 0.0
  %352 = vmatprep.subr.mxu0 0.0
  %353 = vmatpush1.msra.mxu0 0.0
  %354 = vmatprep.subr.mxu0 0.0
  %355 = vmatpush1.msra.mxu0 0.0
  %356 = vmatprep.subr.mxu0 0.0
  %357 = vmatpush1.msra.mxu0 0.0
  %358 = vmatprep.subr.mxu0 0.0
  %359 = vmatpush1.msra.mxu0 0.0
  %360 = vmatprep.subr.mxu0 0.0
  %361 = vmatpush1.msra.mxu0 0.0
  %362 = vmatprep.subr.mxu0 0.0
  %363 = vmatpush1.msra.mxu0 0.0
  %364 = vmatprep.subr.mxu0 0.0
  %365 = vmatpush1.msra.mxu0 0.0
  %366 = vmatprep.subr.mxu0 0.0
  %367 = vmatpush1.msra.mxu0 0.0
  %368 = vmatprep.subr.mxu0 %v330
  %369 = vmatpush1.msra.mxu0 %v329
  %370 = vmatprep.subr.mxu0 0.0
  %371 = vmatpush2.msra.mxu0 0.0
  %372 = vmatprep.subr.mxu0 0.0
  %373 = vmatpush2.msra.mxu0 0.0
  %374 = vmatprep.subr.mxu0 0.0
  %375 = vmatpush2.msra.mxu0 0.0
  %376 = vmatprep.subr.mxu0 0.0
  %377 = vmatpush2.msra.mxu0 0.0
  %378 = vmatprep.subr.mxu0 0.0
  %379 = vmatpush2.msra.mxu0 0.0
  %380 = vmatprep.subr.mxu0 0.0
  %381 = vmatpush2.msra.mxu0 0.0
  %382 = vmatprep.subr.mxu0 0.0
  %383 = vmatpush2.msra.mxu0 0.0
  %384 = vmatprep.subr.mxu0 0.0
  %385 = vmatpush2.msra.mxu0 0.0
  %386 = vmatprep.subr.mxu0 0.0
  %387 = vmatpush2.msra.mxu0 0.0
  %388 = vmatprep.subr.mxu0 0.0
  %389 = vmatpush2.msra.mxu0 0.0
  %390 = vmatprep.subr.mxu0 0.0
  %391 = vmatpush2.msra.mxu0 0.0
  %392 = vmatprep.subr.mxu0 0.0
  %393 = vmatpush2.msra.mxu0 0.0
  %394 = vmatprep.subr.mxu0 0.0
  %395 = vmatpush2.msra.mxu0 0.0
  %396 = vmatprep.subr.mxu0 0.0
  %397 = vmatpush2.msra.mxu0 0.0
  %398 = vmatprep.subr.mxu0 0.0
  %399 = vmatpush2.msra.mxu0 0.0
  %400 = vmatprep.subr.mxu0 0.0
  %401 = vmatpush2.msra.mxu0 0.0
  %402 = vmatprep.mubr.f32.mxu0 0.0
  %403 = vmatmul.mubr.f32.gmra.mxu0 %v336
  %v404 = vpop.f32.mrf.mxu0
  %v405 = vadd.f32 %v332, %v404
  %v406 = vpop.f32.mrf.mxu0
  %v407 = vadd.f32 %v333, %v406
  %408 = vdwg.mxu0
  %v409 = vxor.u32 %v405, 2147483648
  %v410 = vxor.u32 %v407, 2147483648
  %v411 = vmul.f32 %v409, 1.442695
  %v412 = vpow.pop %v411
  %v413 = vmul.f32 %v410, 1.442695
  %v414 = vpow.pop %v413
  %v415 = vadd.f32 %v412, 1.0
  %v416 = vadd.f32 %v414, 1.0
  %v417 = vrcp.pop %v415
  %v418 = vmul.f32 1.0, %v417
  %v419 = vrcp.pop %v416
  %v420 = vmul.f32 1.0, %v419
  %v421 = vmul.f32 %v405, %v418
  %v422 = vmul.f32 %v407, %v420
  %423 = vrot.lane.b32.xlu0 %v421, 17
  %v424 = vpop.permute.xlu0 %423
  %425 = vrot.lane.b32.xlu0 %v422, 17
  %v426 = vpop.permute.xlu0 %425
  %v427 = vsel %vm153, %v424, %v426
  %v428 = vsel %vm153, %v426, %v424
  %v429 = vmul.f32 %v428, %v156
  %v430 = vmul.f32 %v427, %v157
  %431 = vrot.lane.b32.xlu0 %v421, 16
  %v432 = vpop.permute.xlu0 %431
  %433 = vrot.lane.b32.xlu0 %v422, 16
  %v434 = vpop.permute.xlu0 %433
  %v435 = vsel %vm164, %v432, %v434
  %v436 = vsel %vm164, %v434, %v432
  %v437 = vmul.f32 %v436, %v167
  %v438 = vmul.f32 %v435, %v168
  %439 = vrot.lane.b32.xlu0 %v421, 15
  %v440 = vpop.permute.xlu0 %439
  %441 = vrot.lane.b32.xlu0 %v422, 15
  %v442 = vpop.permute.xlu0 %441
  %v443 = vsel %vm175, %v440, %v442
  %v444 = vsel %vm175, %v442, %v440
  %v445 = vmul.f32 %v444, %v178
  %v446 = vmul.f32 %v443, %v179
  %447 = vrot.lane.b32.xlu0 %v421, 1
  %v448 = vpop.permute.xlu0 %447
  %449 = vrot.lane.b32.xlu0 %v422, 1
  %v450 = vpop.permute.xlu0 %449
  %v451 = vsel %vm186, %v448, %v450
  %v452 = vsel %vm186, %v450, %v448
  %v453 = vmul.f32 %v452, %v189
  %v454 = vmul.f32 %v451, %v190
  %455 = vrot.lane.b32.xlu0 %v421, 127
  %v456 = vpop.permute.xlu0 %455
  %457 = vrot.lane.b32.xlu0 %v422, 127
  %v458 = vpop.permute.xlu0 %457
  %v459 = vsel %vm197, %v456, %v458
  %v460 = vsel %vm197, %v458, %v456
  %v461 = vmul.f32 %v459, %v200
  %v462 = vmul.f32 %v460, %v201
  %463 = vrot.lane.b32.xlu0 %v421, 113
  %v464 = vpop.permute.xlu0 %463
  %465 = vrot.lane.b32.xlu0 %v422, 113
  %v466 = vpop.permute.xlu0 %465
  %v467 = vsel %vm208, %v464, %v466
  %v468 = vsel %vm208, %v466, %v464
  %v469 = vmul.f32 %v467, %v211
  %v470 = vmul.f32 %v468, %v212
  %471 = vrot.lane.b32.xlu0 %v421, 112
  %v472 = vpop.permute.xlu0 %471
  %473 = vrot.lane.b32.xlu0 %v422, 112
  %v474 = vpop.permute.xlu0 %473
  %v475 = vsel %vm219, %v472, %v474
  %v476 = vsel %vm219, %v474, %v472
  %v477 = vmul.f32 %v475, %v222
  %v478 = vmul.f32 %v476, %v223
  %479 = vrot.lane.b32.xlu0 %v421, 111
  %v480 = vpop.permute.xlu0 %479
  %481 = vrot.lane.b32.xlu0 %v422, 111
  %v482 = vpop.permute.xlu0 %481
  %v483 = vsel %vm230, %v480, %v482
  %v484 = vsel %vm230, %v482, %v480
  %v485 = vmul.f32 %v483, %v233
  %v486 = vmul.f32 %v484, %v234
  %v487 = vld [vmem:[%s8] sm:$0xff]
  %v489 = vsel %vm238, %v487, 0
  %491 = vmatprep.subr.mxu0 0.0
  %492 = vmatpush1.msra.mxu0 0.0
  %493 = vmatprep.subr.mxu0 0.0
  %494 = vmatpush1.msra.mxu0 0.0
  %495 = vmatprep.subr.mxu0 0.0
  %496 = vmatpush1.msra.mxu0 0.0
  %497 = vmatprep.subr.mxu0 0.0
  %498 = vmatpush1.msra.mxu0 0.0
  %499 = vmatprep.subr.mxu0 0.0
  %500 = vmatpush1.msra.mxu0 0.0
  %501 = vmatprep.subr.mxu0 0.0
  %502 = vmatpush1.msra.mxu0 0.0
  %503 = vmatprep.subr.mxu0 0.0
  %504 = vmatpush1.msra.mxu0 0.0
  %505 = vmatprep.subr.mxu0 %v486
  %506 = vmatpush1.msra.mxu0 %v485
  %507 = vmatprep.subr.mxu0 %v478
  %508 = vmatpush1.msra.mxu0 %v477
  %509 = vmatprep.subr.mxu0 %v470
  %510 = vmatpush1.msra.mxu0 %v469
  %511 = vmatprep.subr.mxu0 %v462
  %512 = vmatpush1.msra.mxu0 %v461
  %513 = vmatprep.subr.mxu0 %v422
  %514 = vmatpush1.msra.mxu0 %v421
  %515 = vmatprep.subr.mxu0 %v454
  %516 = vmatpush1.msra.mxu0 %v453
  %517 = vmatprep.subr.mxu0 %v446
  %518 = vmatpush1.msra.mxu0 %v445
  %519 = vmatprep.subr.mxu0 %v438
  %520 = vmatpush1.msra.mxu0 %v437
  %521 = vmatprep.subr.mxu0 %v430
  %522 = vmatpush1.msra.mxu0 %v429
  %523 = vmatprep.subr.mxu0 0.0
  %524 = vmatpush2.msra.mxu0 0.0
  %525 = vmatprep.subr.mxu0 0.0
  %526 = vmatpush2.msra.mxu0 0.0
  %527 = vmatprep.subr.mxu0 0.0
  %528 = vmatpush2.msra.mxu0 0.0
  %529 = vmatprep.subr.mxu0 0.0
  %530 = vmatpush2.msra.mxu0 0.0
  %531 = vmatprep.subr.mxu0 0.0
  %532 = vmatpush2.msra.mxu0 0.0
  %533 = vmatprep.subr.mxu0 0.0
  %534 = vmatpush2.msra.mxu0 0.0
  %535 = vmatprep.subr.mxu0 0.0
  %536 = vmatpush2.msra.mxu0 0.0
  %537 = vmatprep.subr.mxu0 0.0
  %538 = vmatpush2.msra.mxu0 0.0
  %539 = vmatprep.subr.mxu0 0.0
  %540 = vmatpush2.msra.mxu0 0.0
  %541 = vmatprep.subr.mxu0 0.0
  %542 = vmatpush2.msra.mxu0 0.0
  %543 = vmatprep.subr.mxu0 0.0
  %544 = vmatpush2.msra.mxu0 0.0
  %545 = vmatprep.subr.mxu0 0.0
  %546 = vmatpush2.msra.mxu0 0.0
  %547 = vmatprep.subr.mxu0 0.0
  %548 = vmatpush2.msra.mxu0 0.0
  %549 = vmatprep.subr.mxu0 0.0
  %550 = vmatpush2.msra.mxu0 0.0
  %551 = vmatprep.subr.mxu0 0.0
  %552 = vmatpush2.msra.mxu0 0.0
  %553 = vmatprep.subr.mxu0 0.0
  %554 = vmatpush2.msra.mxu0 0.0
  %555 = vmatprep.mubr.f32.mxu0 0.0
  %556 = vmatmul.mubr.f32.gmra.mxu0 %v489
  %v557 = vpop.f32.mrf.mxu0
  %v558 = vadd.f32 %v329, %v557
  %v559 = vpop.f32.mrf.mxu0
  %v560 = vadd.f32 %v330, %v559
  %561 = vdwg.mxu0
  %v562 = vld [vmem:[%s9] sm:$0xff]
  %v563 = vld [vmem:[%s9 + $0x8] sm:$0xff]
  %v564 = vadd.f32 %v558, %v562
  %v565 = vadd.f32 %v560, %v563
  %v566 = vxor.u32 %v564, 2147483648
  %v567 = vxor.u32 %v565, 2147483648
  %v568 = vmul.f32 %v566, 1.442695
  %v569 = vpow.pop %v568
  %v570 = vmul.f32 %v567, 1.442695
  %v571 = vpow.pop %v570
  %v572 = vadd.f32 %v569, 1.0
  %v573 = vadd.f32 %v571, 1.0
  %v574 = vrcp.pop %v572
  %v575 = vmul.f32 1.0, %v574
  %v576 = vrcp.pop %v573
  %v577 = vmul.f32 1.0, %v576
  %v578 = vmul.f32 %v564, %v575
  %v579 = vmul.f32 %v565, %v577
  %580 = vst [vmem:[%s10] sm:$0xff] %v578
  %581 = vst [vmem:[%s10 + $0x8] sm:$0xff] %v579
  %s582 = scalar_lea.vmem %s1, 8
  %v583 = vld [vmem:[%s582] sm:$0xff]
  %v584 = vld [vmem:[%s2] sm:$0xff]
  %v585 = vld [vmem:[%s2 + $0x8] sm:$0xff]
  %v587 = vcombine.high %v583, %v583
  %v589 = vsel %vm40, %v584, 0
  %v592 = vsel %vm40, %v585, 0
  %v594 = vsel %vm47, %v583, 0
  %v596 = vsel %vm47, %v587, 0
  %598 = vmatprep.subr.mxu0 0.0
  %599 = vmatpush1.msra.mxu0 0.0
  %600 = vmatprep.subr.mxu0 0.0
  %601 = vmatpush1.msra.mxu0 0.0
  %602 = vmatprep.subr.mxu0 0.0
  %603 = vmatpush1.msra.mxu0 0.0
  %604 = vmatprep.subr.mxu0 0.0
  %605 = vmatpush1.msra.mxu0 0.0
  %606 = vmatprep.subr.mxu0 0.0
  %607 = vmatpush1.msra.mxu0 0.0
  %608 = vmatprep.subr.mxu0 0.0
  %609 = vmatpush1.msra.mxu0 0.0
  %610 = vmatprep.subr.mxu0 0.0
  %611 = vmatpush1.msra.mxu0 0.0
  %612 = vmatprep.subr.mxu0 0.0
  %613 = vmatpush1.msra.mxu0 0.0
  %614 = vmatprep.subr.mxu0 0.0
  %615 = vmatpush1.msra.mxu0 0.0
  %616 = vmatprep.subr.mxu0 0.0
  %617 = vmatpush1.msra.mxu0 0.0
  %618 = vmatprep.subr.mxu0 0.0
  %619 = vmatpush1.msra.mxu0 0.0
  %620 = vmatprep.subr.mxu0 0.0
  %621 = vmatpush1.msra.mxu0 0.0
  %622 = vmatprep.subr.mxu0 0.0
  %623 = vmatpush1.msra.mxu0 0.0
  %624 = vmatprep.subr.mxu0 0.0
  %625 = vmatpush1.msra.mxu0 0.0
  %626 = vmatprep.subr.mxu0 0.0
  %627 = vmatpush1.msra.mxu0 0.0
  %628 = vmatprep.subr.mxu0 %v596
  %629 = vmatpush1.msra.mxu0 %v594
  %630 = vmatprep.subr.mxu0 0.0
  %631 = vmatpush2.msra.mxu0 0.0
  %632 = vmatprep.subr.mxu0 0.0
  %633 = vmatpush2.msra.mxu0 0.0
  %634 = vmatprep.subr.mxu0 0.0
  %635 = vmatpush2.msra.mxu0 0.0
  %636 = vmatprep.subr.mxu0 0.0
  %637 = vmatpush2.msra.mxu0 0.0
  %638 = vmatprep.subr.mxu0 0.0
  %639 = vmatpush2.msra.mxu0 0.0
  %640 = vmatprep.subr.mxu0 0.0
  %641 = vmatpush2.msra.mxu0 0.0
  %642 = vmatprep.subr.mxu0 0.0
  %643 = vmatpush2.msra.mxu0 0.0
  %644 = vmatprep.subr.mxu0 0.0
  %645 = vmatpush2.msra.mxu0 0.0
  %646 = vmatprep.subr.mxu0 0.0
  %647 = vmatpush2.msra.mxu0 0.0
  %648 = vmatprep.subr.mxu0 0.0
  %649 = vmatpush2.msra.mxu0 0.0
  %650 = vmatprep.subr.mxu0 0.0
  %651 = vmatpush2.msra.mxu0 0.0
  %652 = vmatprep.subr.mxu0 0.0
  %653 = vmatpush2.msra.mxu0 0.0
  %654 = vmatprep.subr.mxu0 0.0
  %655 = vmatpush2.msra.mxu0 0.0
  %656 = vmatprep.subr.mxu0 0.0
  %657 = vmatpush2.msra.mxu0 0.0
  %658 = vmatprep.subr.mxu0 0.0
  %659 = vmatpush2.msra.mxu0 0.0
  %660 = vmatprep.subr.mxu0 0.0
  %661 = vmatpush2.msra.mxu0 0.0
  %662 = vmatprep.mubr.f32.mxu0 0.0
  %663 = vmatmul.mubr.f32.gmra.mxu0 %v589
  %v664 = vpop.f32.mrf.mxu0
  %v665 = vadd.f32 0.0, %v664
  %v666 = vpop.f32.mrf.mxu0
  %v667 = vadd.f32 0.0, %v666
  %668 = vmatprep.mubr.f32.mxu0 0.0
  %669 = vmatmul.mubr.f32.gmra.mxu0 %v592
  %v670 = vpop.f32.mrf.mxu0
  %v671 = vadd.f32 0.0, %v670
  %v672 = vpop.f32.mrf.mxu0
  %v673 = vadd.f32 0.0, %v672
  %674 = vdwg.mxu0
  %v675 = vld [vmem:[%s3] sm:$0xff]
  %v676 = vld [vmem:[%s3 + $0x8] sm:$0xff]
  %v677 = vadd.f32 %v665, %v675
  %v678 = vadd.f32 %v667, %v676
  %v679 = vxor.u32 %v677, 2147483648
  %v680 = vxor.u32 %v678, 2147483648
  %v681 = vmul.f32 %v679, 1.442695
  %v682 = vpow.pop %v681
  %v683 = vmul.f32 %v680, 1.442695
  %v684 = vpow.pop %v683
  %v685 = vadd.f32 %v682, 1.0
  %v686 = vadd.f32 %v684, 1.0
  %v687 = vrcp.pop %v685
  %v688 = vmul.f32 1.0, %v687
  %v689 = vrcp.pop %v686
  %v690 = vmul.f32 1.0, %v689
  %v691 = vmul.f32 %v677, %v688
  %v692 = vmul.f32 %v678, %v690
  %693 = vrot.lane.b32.xlu0 %v691, 17
  %v694 = vpop.permute.xlu0 %693
  %695 = vrot.lane.b32.xlu0 %v692, 17
  %v696 = vpop.permute.xlu0 %695
  %v697 = vsel %vm153, %v694, %v696
  %v698 = vsel %vm153, %v696, %v694
  %v699 = vld [vmem:[%s0] sm:$0xff]
  %v700 = vld [vmem:[%s0 + $0x8] sm:$0xff]
  %v701 = vmul.f32 %v698, %v699
  %v702 = vmul.f32 %v697, %v700
  %703 = vrot.lane.b32.xlu0 %v691, 16
  %v704 = vpop.permute.xlu0 %703
  %705 = vrot.lane.b32.xlu0 %v692, 16
  %v706 = vpop.permute.xlu0 %705
  %v707 = vsel %vm164, %v704, %v706
  %v708 = vsel %vm164, %v706, %v704
  %v709 = vld [vmem:[%s0 + $0x10] sm:$0xff]
  %v710 = vld [vmem:[%s0 + $0x18] sm:$0xff]
  %v711 = vmul.f32 %v708, %v709
  %v712 = vmul.f32 %v707, %v710
  %713 = vrot.lane.b32.xlu0 %v691, 15
  %v714 = vpop.permute.xlu0 %713
  %715 = vrot.lane.b32.xlu0 %v692, 15
  %v716 = vpop.permute.xlu0 %715
  %v717 = vsel %vm175, %v714, %v716
  %v718 = vsel %vm175, %v716, %v714
  %v719 = vld [vmem:[%s0 + $0x20] sm:$0xff]
  %v720 = vld [vmem:[%s0 + $0x28] sm:$0xff]
  %v721 = vmul.f32 %v718, %v719
  %v722 = vmul.f32 %v717, %v720
  %723 = vrot.lane.b32.xlu0 %v691, 1
  %v724 = vpop.permute.xlu0 %723
  %725 = vrot.lane.b32.xlu0 %v692, 1
  %v726 = vpop.permute.xlu0 %725
  %v727 = vsel %vm186, %v724, %v726
  %v728 = vsel %vm186, %v726, %v724
  %v729 = vld [vmem:[%s0 + $0x30] sm:$0xff]
  %v730 = vld [vmem:[%s0 + $0x38] sm:$0xff]
  %v731 = vmul.f32 %v728, %v729
  %v732 = vmul.f32 %v727, %v730
  %733 = vrot.lane.b32.xlu0 %v691, 127
  %v734 = vpop.permute.xlu0 %733
  %735 = vrot.lane.b32.xlu0 %v692, 127
  %v736 = vpop.permute.xlu0 %735
  %v737 = vsel %vm197, %v734, %v736
  %v738 = vsel %vm197, %v736, %v734
  %v739 = vld [vmem:[%s0 + $0x50] sm:$0xff]
  %v740 = vld [vmem:[%s0 + $0x58] sm:$0xff]
  %v741 = vmul.f32 %v737, %v739
  %v742 = vmul.f32 %v738, %v740
  %743 = vrot.lane.b32.xlu0 %v691, 113
  %v744 = vpop.permute.xlu0 %743
  %745 = vrot.lane.b32.xlu0 %v692, 113
  %v746 = vpop.permute.xlu0 %745
  %v747 = vsel %vm208, %v744, %v746
  %v748 = vsel %vm208, %v746, %v744
  %v749 = vld [vmem:[%s0 + $0x60] sm:$0xff]
  %v750 = vld [vmem:[%s0 + $0x68] sm:$0xff]
  %v751 = vmul.f32 %v747, %v749
  %v752 = vmul.f32 %v748, %v750
  %753 = vrot.lane.b32.xlu0 %v691, 112
  %v754 = vpop.permute.xlu0 %753
  %755 = vrot.lane.b32.xlu0 %v692, 112
  %v756 = vpop.permute.xlu0 %755
  %v757 = vsel %vm219, %v754, %v756
  %v758 = vsel %vm219, %v756, %v754
  %v759 = vld [vmem:[%s0 + $0x70] sm:$0xff]
  %v760 = vld [vmem:[%s0 + $0x78] sm:$0xff]
  %v761 = vmul.f32 %v757, %v759
  %v762 = vmul.f32 %v758, %v760
  %763 = vrot.lane.b32.xlu0 %v691, 111
  %v764 = vpop.permute.xlu0 %763
  %765 = vrot.lane.b32.xlu0 %v692, 111
  %v766 = vpop.permute.xlu0 %765
  %v767 = vsel %vm230, %v764, %v766
  %v768 = vsel %vm230, %v766, %v764
  %v769 = vld [vmem:[%s0 + $0x80] sm:$0xff]
  %v770 = vld [vmem:[%s0 + $0x88] sm:$0xff]
  %v771 = vmul.f32 %v767, %v769
  %v772 = vmul.f32 %v768, %v770
  %v773 = vld [vmem:[%s4] sm:$0xff]
  %v775 = vsel %vm238, %v773, 0
  %777 = vmatprep.subr.mxu0 0.0
  %778 = vmatpush1.msra.mxu0 0.0
  %779 = vmatprep.subr.mxu0 0.0
  %780 = vmatpush1.msra.mxu0 0.0
  %781 = vmatprep.subr.mxu0 0.0
  %782 = vmatpush1.msra.mxu0 0.0
  %783 = vmatprep.subr.mxu0 0.0
  %784 = vmatpush1.msra.mxu0 0.0
  %785 = vmatprep.subr.mxu0 0.0
  %786 = vmatpush1.msra.mxu0 0.0
  %787 = vmatprep.subr.mxu0 0.0
  %788 = vmatpush1.msra.mxu0 0.0
  %789 = vmatprep.subr.mxu0 0.0
  %790 = vmatpush1.msra.mxu0 0.0
  %791 = vmatprep.subr.mxu0 %v772
  %792 = vmatpush1.msra.mxu0 %v771
  %793 = vmatprep.subr.mxu0 %v762
  %794 = vmatpush1.msra.mxu0 %v761
  %795 = vmatprep.subr.mxu0 %v752
  %796 = vmatpush1.msra.mxu0 %v751
  %797 = vmatprep.subr.mxu0 %v742
  %798 = vmatpush1.msra.mxu0 %v741
  %799 = vmatprep.subr.mxu0 %v692
  %800 = vmatpush1.msra.mxu0 %v691
  %801 = vmatprep.subr.mxu0 %v732
  %802 = vmatpush1.msra.mxu0 %v731
  %803 = vmatprep.subr.mxu0 %v722
  %804 = vmatpush1.msra.mxu0 %v721
  %805 = vmatprep.subr.mxu0 %v712
  %806 = vmatpush1.msra.mxu0 %v711
  %807 = vmatprep.subr.mxu0 %v702
  %808 = vmatpush1.msra.mxu0 %v701
  %809 = vmatprep.subr.mxu0 0.0
  %810 = vmatpush2.msra.mxu0 0.0
  %811 = vmatprep.subr.mxu0 0.0
  %812 = vmatpush2.msra.mxu0 0.0
  %813 = vmatprep.subr.mxu0 0.0
  %814 = vmatpush2.msra.mxu0 0.0
  %815 = vmatprep.subr.mxu0 0.0
  %816 = vmatpush2.msra.mxu0 0.0
  %817 = vmatprep.subr.mxu0 0.0
  %818 = vmatpush2.msra.mxu0 0.0
  %819 = vmatprep.subr.mxu0 0.0
  %820 = vmatpush2.msra.mxu0 0.0
  %821 = vmatprep.subr.mxu0 0.0
  %822 = vmatpush2.msra.mxu0 0.0
  %823 = vmatprep.subr.mxu0 0.0
  %824 = vmatpush2.msra.mxu0 0.0
  %825 = vmatprep.subr.mxu0 0.0
  %826 = vmatpush2.msra.mxu0 0.0
  %827 = vmatprep.subr.mxu0 0.0
  %828 = vmatpush2.msra.mxu0 0.0
  %829 = vmatprep.subr.mxu0 0.0
  %830 = vmatpush2.msra.mxu0 0.0
  %831 = vmatprep.subr.mxu0 0.0
  %832 = vmatpush2.msra.mxu0 0.0
  %833 = vmatprep.subr.mxu0 0.0
  %834 = vmatpush2.msra.mxu0 0.0
  %835 = vmatprep.subr.mxu0 0.0
  %836 = vmatpush2.msra.mxu0 0.0
  %837 = vmatprep.subr.mxu0 0.0
  %838 = vmatpush2.msra.mxu0 0.0
  %839 = vmatprep.subr.mxu0 0.0
  %840 = vmatpush2.msra.mxu0 0.0
  %841 = vmatprep.mubr.f32.mxu0 0.0
  %842 = vmatmul.mubr.f32.gmra.mxu0 %v775
  %v843 = vpop.f32.mrf.mxu0
  %v844 = vadd.f32 %v671, %v843
  %v845 = vpop.f32.mrf.mxu0
  %v846 = vadd.f32 %v673, %v845
  %847 = vdwg.mxu0
  %v848 = vld [vmem:[%s5] sm:$0xff]
  %v849 = vld [vmem:[%s5 + $0x8] sm:$0xff]
  %v850 = vadd.f32 %v844, %v848
  %v851 = vadd.f32 %v846, %v849
  %v852 = vxor.u32 %v850, 2147483648
  %v853 = vxor.u32 %v851, 2147483648
  %v854 = vmul.f32 %v852, 1.442695
  %v855 = vpow.pop %v854
  %v856 = vmul.f32 %v853, 1.442695
  %v857 = vpow.pop %v856
  %v858 = vadd.f32 %v855, 1.0
  %v859 = vadd.f32 %v857, 1.0
  %v860 = vrcp.pop %v858
  %v861 = vmul.f32 1.0, %v860
  %v862 = vrcp.pop %v859
  %v863 = vmul.f32 1.0, %v862
  %v864 = vmul.f32 %v850, %v861
  %v865 = vmul.f32 %v851, %v863
  %v866 = vld [vmem:[%s6] sm:$0xff]
  %v867 = vld [vmem:[%s7] sm:$0xff]
  %v868 = vld [vmem:[%s7 + $0x8] sm:$0xff]
  %v870 = vsel %vm334, %v866, 0
  %872 = vmatprep.subr.mxu0 0.0
  %873 = vmatpush1.msra.mxu0 0.0
  %874 = vmatprep.subr.mxu0 0.0
  %875 = vmatpush1.msra.mxu0 0.0
  %876 = vmatprep.subr.mxu0 0.0
  %877 = vmatpush1.msra.mxu0 0.0
  %878 = vmatprep.subr.mxu0 0.0
  %879 = vmatpush1.msra.mxu0 0.0
  %880 = vmatprep.subr.mxu0 0.0
  %881 = vmatpush1.msra.mxu0 0.0
  %882 = vmatprep.subr.mxu0 0.0
  %883 = vmatpush1.msra.mxu0 0.0
  %884 = vmatprep.subr.mxu0 0.0
  %885 = vmatpush1.msra.mxu0 0.0
  %886 = vmatprep.subr.mxu0 0.0
  %887 = vmatpush1.msra.mxu0 0.0
  %888 = vmatprep.subr.mxu0 0.0
  %889 = vmatpush1.msra.mxu0 0.0
  %890 = vmatprep.subr.mxu0 0.0
  %891 = vmatpush1.msra.mxu0 0.0
  %892 = vmatprep.subr.mxu0 0.0
  %893 = vmatpush1.msra.mxu0 0.0
  %894 = vmatprep.subr.mxu0 0.0
  %895 = vmatpush1.msra.mxu0 0.0
  %896 = vmatprep.subr.mxu0 0.0
  %897 = vmatpush1.msra.mxu0 0.0
  %898 = vmatprep.subr.mxu0 0.0
  %899 = vmatpush1.msra.mxu0 0.0
  %900 = vmatprep.subr.mxu0 0.0
  %901 = vmatpush1.msra.mxu0 0.0
  %902 = vmatprep.subr.mxu0 %v865
  %903 = vmatpush1.msra.mxu0 %v864
  %904 = vmatprep.subr.mxu0 0.0
  %905 = vmatpush2.msra.mxu0 0.0
  %906 = vmatprep.subr.mxu0 0.0
  %907 = vmatpush2.msra.mxu0 0.0
  %908 = vmatprep.subr.mxu0 0.0
  %909 = vmatpush2.msra.mxu0 0.0
  %910 = vmatprep.subr.mxu0 0.0
  %911 = vmatpush2.msra.mxu0 0.0
  %912 = vmatprep.subr.mxu0 0.0
  %913 = vmatpush2.msra.mxu0 0.0
  %914 = vmatprep.subr.mxu0 0.0
  %915 = vmatpush2.msra.mxu0 0.0
  %916 = vmatprep.subr.mxu0 0.0
  %917 = vmatpush2.msra.mxu0 0.0
  %918 = vmatprep.subr.mxu0 0.0
  %919 = vmatpush2.msra.mxu0 0.0
  %920 = vmatprep.subr.mxu0 0.0
  %921 = vmatpush2.msra.mxu0 0.0
  %922 = vmatprep.subr.mxu0 0.0
  %923 = vmatpush2.msra.mxu0 0.0
  %924 = vmatprep.subr.mxu0 0.0
  %925 = vmatpush2.msra.mxu0 0.0
  %926 = vmatprep.subr.mxu0 0.0
  %927 = vmatpush2.msra.mxu0 0.0
  %928 = vmatprep.subr.mxu0 0.0
  %929 = vmatpush2.msra.mxu0 0.0
  %930 = vmatprep.subr.mxu0 0.0
  %931 = vmatpush2.msra.mxu0 0.0
  %932 = vmatprep.subr.mxu0 0.0
  %933 = vmatpush2.msra.mxu0 0.0
  %934 = vmatprep.subr.mxu0 0.0
  %935 = vmatpush2.msra.mxu0 0.0
  %936 = vmatprep.mubr.f32.mxu0 0.0
  %937 = vmatmul.mubr.f32.gmra.mxu0 %v870
  %v938 = vpop.f32.mrf.mxu0
  %v939 = vadd.f32 %v867, %v938
  %v940 = vpop.f32.mrf.mxu0
  %v941 = vadd.f32 %v868, %v940
  %942 = vdwg.mxu0
  %v943 = vxor.u32 %v939, 2147483648
  %v944 = vxor.u32 %v941, 2147483648
  %v945 = vmul.f32 %v943, 1.442695
  %v946 = vpow.pop %v945
  %v947 = vmul.f32 %v944, 1.442695
  %v948 = vpow.pop %v947
  %v949 = vadd.f32 %v946, 1.0
  %v950 = vadd.f32 %v948, 1.0
  %v951 = vrcp.pop %v949
  %v952 = vmul.f32 1.0, %v951
  %v953 = vrcp.pop %v950
  %v954 = vmul.f32 1.0, %v953
  %v955 = vmul.f32 %v939, %v952
  %v956 = vmul.f32 %v941, %v954
  %957 = vrot.lane.b32.xlu0 %v955, 17
  %v958 = vpop.permute.xlu0 %957
  %959 = vrot.lane.b32.xlu0 %v956, 17
  %v960 = vpop.permute.xlu0 %959
  %v961 = vsel %vm153, %v958, %v960
  %v962 = vsel %vm153, %v960, %v958
  %v963 = vmul.f32 %v962, %v699
  %v964 = vmul.f32 %v961, %v700
  %965 = vrot.lane.b32.xlu0 %v955, 16
  %v966 = vpop.permute.xlu0 %965
  %967 = vrot.lane.b32.xlu0 %v956, 16
  %v968 = vpop.permute.xlu0 %967
  %v969 = vsel %vm164, %v966, %v968
  %v970 = vsel %vm164, %v968, %v966
  %v971 = vmul.f32 %v970, %v709
  %v972 = vmul.f32 %v969, %v710
  %973 = vrot.lane.b32.xlu0 %v955, 15
  %v974 = vpop.permute.xlu0 %973
  %975 = vrot.lane.b32.xlu0 %v956, 15
  %v976 = vpop.permute.xlu0 %975
  %v977 = vsel %vm175, %v974, %v976
  %v978 = vsel %vm175, %v976, %v974
  %v979 = vmul.f32 %v978, %v719
  %v980 = vmul.f32 %v977, %v720
  %981 = vrot.lane.b32.xlu0 %v955, 1
  %v982 = vpop.permute.xlu0 %981
  %983 = vrot.lane.b32.xlu0 %v956, 1
  %v984 = vpop.permute.xlu0 %983
  %v985 = vsel %vm186, %v982, %v984
  %v986 = vsel %vm186, %v984, %v982
  %v987 = vmul.f32 %v986, %v729
  %v988 = vmul.f32 %v985, %v730
  %989 = vrot.lane.b32.xlu0 %v955, 127
  %v990 = vpop.permute.xlu0 %989
  %991 = vrot.lane.b32.xlu0 %v956, 127
  %v992 = vpop.permute.xlu0 %991
  %v993 = vsel %vm197, %v990, %v992
  %v994 = vsel %vm197, %v992, %v990
  %v995 = vmul.f32 %v993, %v739
  %v996 = vmul.f32 %v994, %v740
  %997 = vrot.lane.b32.xlu0 %v955, 113
  %v998 = vpop.permute.xlu0 %997
  %999 = vrot.lane.b32.xlu0 %v956, 113
  %v1000 = vpop.permute.xlu0 %999
  %v1001 = vsel %vm208, %v998, %v1000
  %v1002 = vsel %vm208, %v1000, %v998
  %v1003 = vmul.f32 %v1001, %v749
  %v1004 = vmul.f32 %v1002, %v750
  %1005 = vrot.lane.b32.xlu0 %v955, 112
  %v1006 = vpop.permute.xlu0 %1005
  %1007 = vrot.lane.b32.xlu0 %v956, 112
  %v1008 = vpop.permute.xlu0 %1007
  %v1009 = vsel %vm219, %v1006, %v1008
  %v1010 = vsel %vm219, %v1008, %v1006
  %v1011 = vmul.f32 %v1009, %v759
  %v1012 = vmul.f32 %v1010, %v760
  %1013 = vrot.lane.b32.xlu0 %v955, 111
  %v1014 = vpop.permute.xlu0 %1013
  %1015 = vrot.lane.b32.xlu0 %v956, 111
  %v1016 = vpop.permute.xlu0 %1015
  %v1017 = vsel %vm230, %v1014, %v1016
  %v1018 = vsel %vm230, %v1016, %v1014
  %v1019 = vmul.f32 %v1017, %v769
  %v1020 = vmul.f32 %v1018, %v770
  %v1021 = vld [vmem:[%s8] sm:$0xff]
  %v1023 = vsel %vm238, %v1021, 0
  %1025 = vmatprep.subr.mxu0 0.0
  %1026 = vmatpush1.msra.mxu0 0.0
  %1027 = vmatprep.subr.mxu0 0.0
  %1028 = vmatpush1.msra.mxu0 0.0
  %1029 = vmatprep.subr.mxu0 0.0
  %1030 = vmatpush1.msra.mxu0 0.0
  %1031 = vmatprep.subr.mxu0 0.0
  %1032 = vmatpush1.msra.mxu0 0.0
  %1033 = vmatprep.subr.mxu0 0.0
  %1034 = vmatpush1.msra.mxu0 0.0
  %1035 = vmatprep.subr.mxu0 0.0
  %1036 = vmatpush1.msra.mxu0 0.0
  %1037 = vmatprep.subr.mxu0 0.0
  %1038 = vmatpush1.msra.mxu0 0.0
  %1039 = vmatprep.subr.mxu0 %v1020
  %1040 = vmatpush1.msra.mxu0 %v1019
  %1041 = vmatprep.subr.mxu0 %v1012
  %1042 = vmatpush1.msra.mxu0 %v1011
  %1043 = vmatprep.subr.mxu0 %v1004
  %1044 = vmatpush1.msra.mxu0 %v1003
  %1045 = vmatprep.subr.mxu0 %v996
  %1046 = vmatpush1.msra.mxu0 %v995
  %1047 = vmatprep.subr.mxu0 %v956
  %1048 = vmatpush1.msra.mxu0 %v955
  %1049 = vmatprep.subr.mxu0 %v988
  %1050 = vmatpush1.msra.mxu0 %v987
  %1051 = vmatprep.subr.mxu0 %v980
  %1052 = vmatpush1.msra.mxu0 %v979
  %1053 = vmatprep.subr.mxu0 %v972
  %1054 = vmatpush1.msra.mxu0 %v971
  %1055 = vmatprep.subr.mxu0 %v964
  %1056 = vmatpush1.msra.mxu0 %v963
  %1057 = vmatprep.subr.mxu0 0.0
  %1058 = vmatpush2.msra.mxu0 0.0
  %1059 = vmatprep.subr.mxu0 0.0
  %1060 = vmatpush2.msra.mxu0 0.0
  %1061 = vmatprep.subr.mxu0 0.0
  %1062 = vmatpush2.msra.mxu0 0.0
  %1063 = vmatprep.subr.mxu0 0.0
  %1064 = vmatpush2.msra.mxu0 0.0
  %1065 = vmatprep.subr.mxu0 0.0
  %1066 = vmatpush2.msra.mxu0 0.0
  %1067 = vmatprep.subr.mxu0 0.0
  %1068 = vmatpush2.msra.mxu0 0.0
  %1069 = vmatprep.subr.mxu0 0.0
  %1070 = vmatpush2.msra.mxu0 0.0
  %1071 = vmatprep.subr.mxu0 0.0
  %1072 = vmatpush2.msra.mxu0 0.0
  %1073 = vmatprep.subr.mxu0 0.0
  %1074 = vmatpush2.msra.mxu0 0.0
  %1075 = vmatprep.subr.mxu0 0.0
  %1076 = vmatpush2.msra.mxu0 0.0
  %1077 = vmatprep.subr.mxu0 0.0
  %1078 = vmatpush2.msra.mxu0 0.0
  %1079 = vmatprep.subr.mxu0 0.0
  %1080 = vmatpush2.msra.mxu0 0.0
  %1081 = vmatprep.subr.mxu0 0.0
  %1082 = vmatpush2.msra.mxu0 0.0
  %1083 = vmatprep.subr.mxu0 0.0
  %1084 = vmatpush2.msra.mxu0 0.0
  %1085 = vmatprep.subr.mxu0 0.0
  %1086 = vmatpush2.msra.mxu0 0.0
  %1087 = vmatprep.subr.mxu0 0.0
  %1088 = vmatpush2.msra.mxu0 0.0
  %1089 = vmatprep.mubr.f32.mxu0 0.0
  %1090 = vmatmul.mubr.f32.gmra.mxu0 %v1023
  %v1091 = vpop.f32.mrf.mxu0
  %v1092 = vadd.f32 %v864, %v1091
  %v1093 = vpop.f32.mrf.mxu0
  %v1094 = vadd.f32 %v865, %v1093
  %1095 = vdwg.mxu0
  %v1096 = vld [vmem:[%s9] sm:$0xff]
  %v1097 = vld [vmem:[%s9 + $0x8] sm:$0xff]
  %v1098 = vadd.f32 %v1092, %v1096
  %v1099 = vadd.f32 %v1094, %v1097
  %v1100 = vxor.u32 %v1098, 2147483648
  %v1101 = vxor.u32 %v1099, 2147483648
  %v1102 = vmul.f32 %v1100, 1.442695
  %v1103 = vpow.pop %v1102
  %v1104 = vmul.f32 %v1101, 1.442695
  %v1105 = vpow.pop %v1104
  %v1106 = vadd.f32 %v1103, 1.0
  %v1107 = vadd.f32 %v1105, 1.0
  %v1108 = vrcp.pop %v1106
  %v1109 = vmul.f32 1.0, %v1108
  %v1110 = vrcp.pop %v1107
  %v1111 = vmul.f32 1.0, %v1110
  %v1112 = vmul.f32 %v1098, %v1109
  %v1113 = vmul.f32 %v1099, %v1111
  %s1114 = scalar_lea.vmem %s10, 16
  %1115 = vst [vmem:[%s1114] sm:$0xff] %v1112
  %1116 = vst [vmem:[%s1114 + $0x8] sm:$0xff] %v1113
  // Predicated region
  $region42: #{_lambda_.1} parent=0 // pred_check
    _
  $region43: #{_lambda_.1} parent=0 // pred_check_branch
    %1118 = sbr.rel (0) target = $region45
  $region44: #{_lambda_.1} parent=0 // pred_region
    _
  $region45: #{_lambda_.1} parent=0 // pred_fallthru
    _
  // Predicated region
  $region46: #{_lambda_.1} parent=0 // pred_check
    _
  $region47: #{_lambda_.1} parent=0 // pred_check_branch
    %1120 = sbr.rel (0) target = $region49
  $region48: #{_lambda_.1} parent=0 // pred_region
    _
  $region49: #{_lambda_.1} parent=0 // pred_fallthru
    _

</llo_original>
